<compile_context>
chip_gen: v7x
topology: tpu7x:2x2x1
jax: 0.10.0
libtpu: 0.0.40
codegen_flags: <defaults>
</compile_context>

<pallas_src>
import functools

import numpy as np
import jax
import jax.numpy as jnp
from jax import lax
from jax.experimental import pallas as pl
from jax.experimental.pallas import tpu as pltpu


# ----------------------------------------------------------------------------
# Pallas kernels
# ----------------------------------------------------------------------------
def _conv3x3_bn_relu_kernel(w_ref, b_ref, x_ref, o_ref, *, Ho, Wo):
    """3x3 conv (pad=1, BN folded) + ReLU.  x block: (1, Ho+2, Wo+2, Cin)."""
    cin = w_ref.shape[1]
    cout = w_ref.shape[2]
    acc = jnp.zeros((Ho * Wo, cout), jnp.float32)
    for t in range(9):
        kh, kw = divmod(t, 3)
        xs = x_ref[0, kh:kh + Ho, kw:kw + Wo, :].reshape(Ho * Wo, cin)
        acc = acc + jnp.dot(xs, w_ref[t], preferred_element_type=jnp.float32)
    o_ref[0] = jnp.maximum(acc + b_ref[...], 0.0).astype(o_ref.dtype)


def _conv3x3_bn_relu_up_kernel(w_ref, b_ref, m_ref, x_ref, o_ref, *, Hs, Ws):
    """3x3 conv + BN + ReLU, then bilinear upsample fused as M @ y."""
    cin = w_ref.shape[1]
    cout = w_ref.shape[2]
    acc = jnp.zeros((Hs * Ws, cout), jnp.float32)
    for t in range(9):
        kh, kw = divmod(t, 3)
        xs = x_ref[0, kh:kh + Hs, kw:kw + Ws, :].reshape(Hs * Ws, cin)
        acc = acc + jnp.dot(xs, w_ref[t], preferred_element_type=jnp.float32)
    y = jnp.maximum(acc + b_ref[...], 0.0)                     # (Hs*Ws, Cout)
    o_ref[0] = jnp.dot(m_ref[...], y,
                       preferred_element_type=jnp.float32).astype(o_ref.dtype)


def _dilated_sepconv_kernel(wdw_ref, b1_ref, wpw_ref, b2_ref, x_ref, o_ref,
                            *, H, W, pad, dils):
    """All four dilated SeparableConv2d branches (+BN+ReLU), fused.

    x block: (1, H+2*pad, W+2*pad, 3w).  Output: (1, H*W, 4*w).
    """
    C = wdw_ref.shape[-1]
    outs = []
    for br, d in enumerate(dils):
        # depthwise 3x3, dilation d (BN1 folded into weights / bias)
        acc = jnp.zeros((H, W, C), jnp.float32)
        for t in range(9):
            kh, kw = divmod(t, 3)
            ro = pad + (kh - 1) * d
            co = pad + (kw - 1) * d
            xs = x_ref[0, ro:ro + H, co:co + W, :]             # (H, W, C)
            acc = acc + xs * wdw_ref[br, t:t + 1, :]           # (H,W,C)*(1,C)
        h = (acc + b1_ref[br]).reshape(H * W, C)
        # pointwise 1x1 (BN2 folded) + ReLU
        y = jnp.dot(h, wpw_ref[br],
                    preferred_element_type=jnp.float32) + b2_ref[br]
        outs.append(jnp.maximum(y, 0.0))
    o_ref[0] = jnp.concatenate(outs, axis=-1).astype(o_ref.dtype)


# ----------------------------------------------------------------------------
# Host-side helpers
# ----------------------------------------------------------------------------
def _bilinear_matrix(out_size, in_size):
    """Dense kron(Ah, Aw) interpolation matrix for align_corners=True."""
    Ho, Wo = out_size
    Hs, Ws = in_size

    def axis_mat(o, s):
        A = np.zeros((o, s), np.float32)
        if o == 1 or s == 1:
            A[:, 0] = 1.0
            return A
        scale = (s - 1) / (o - 1)
        for i in range(o):
            src = i * scale
            p0 = int(np.floor(src))
            p1 = min(p0 + 1, s - 1)
            f = src - p0
            A[i, p0] += 1.0 - f
            A[i, p1] += f
        return A

    # row-major flattening: out[(i*Wo+j)] <- in[(p*Ws+q)]
    return np.kron(axis_mat(Ho, Hs), axis_mat(Wo, Ws)).astype(np.float32)


def jpu_forward(params, x3, x4, x5, width):
    """JPU forward.  x3/x4/x5 are inputs[-3]/[-2]/[-1] in NCHW (f32)."""
    eps = 1e-5
    B, _, H, W = x3.shape
    dils = (1, 2, 4, 8)
    maxd = max(dils)
    c3w = 3 * width

    def fold_head(w_t, bn):
        g, b, m, v = bn
        s = g / jnp.sqrt(v + eps)
        w = jnp.transpose(w_t, (2, 3, 1, 0)) * s            # (3,3,cin,cout)
        return w.reshape(9, w.shape[2], w.shape[3]), (b - m * s)[None, :]

    def run_head(x_nchw, name, m_up=None):
        w9, bias = fold_head(params[name + "_w"], params[name + "_bn"])
        x = jnp.transpose(x_nchw, (0, 2, 3, 1)).astype(jnp.float32)
        xp = jnp.pad(x, ((0, 0), (1, 1), (1, 1), (0, 0)))
        Bb, Hp, Wp, cin = xp.shape
        Hs, Ws = Hp - 2, Wp - 2
        cout = w9.shape[-1]
        if m_up is None:
            nout = Hs * Ws
            kern = functools.partial(_conv3x3_bn_relu_kernel, Ho=Hs, Wo=Ws)
            in_specs = [
                pl.BlockSpec((9, cin, cout), lambda i: (0, 0, 0)),
                pl.BlockSpec((1, cout), lambda i: (0, 0)),
                pl.BlockSpec((1, Hp, Wp, cin), lambda i: (i, 0, 0, 0)),
            ]
            args = (w9, bias, xp)
        else:
            nout = m_up.shape[0]
            kern = functools.partial(_conv3x3_bn_relu_up_kernel, Hs=Hs, Ws=Ws)
            in_specs = [
                pl.BlockSpec((9, cin, cout), lambda i: (0, 0, 0)),
                pl.BlockSpec((1, cout), lambda i: (0, 0)),
                pl.BlockSpec(m_up.shape, lambda i: (0, 0)),
                pl.BlockSpec((1, Hp, Wp, cin), lambda i: (i, 0, 0, 0)),
            ]
            args = (w9, bias, m_up, xp)
        return pl.pallas_call(
            kern,
            out_shape=jax.ShapeDtypeStruct((Bb, nout, cout), jnp.float32),
            grid_spec=pltpu.PrefetchScalarGridSpec(
                num_scalar_prefetch=0,
                grid=(Bb,),
                in_specs=in_specs,
                out_specs=pl.BlockSpec((1, nout, cout), lambda i: (i, 0, 0)),
            ),
            compiler_params=pltpu.CompilerParams(
                dimension_semantics=("parallel",)),
        )(*args)

    m5 = jnp.asarray(_bilinear_matrix((H, W), (x5.shape[2], x5.shape[3])))
    m4 = jnp.asarray(_bilinear_matrix((H, W), (x4.shape[2], x4.shape[3])))

    f5 = run_head(x5, "conv5", m5)          # (B, H*W, width)
    f4 = run_head(x4, "conv4", m4)          # (B, H*W, width)
    f3 = run_head(x3, "conv3")              # (B, H*W, width)

    feat = jnp.concatenate([f5, f4, f3], axis=-1)            # (B, H*W, 3w)
    feat = feat.reshape(B, H, W, c3w)
    feat_pad = jnp.pad(feat, ((0, 0), (maxd, maxd), (maxd, maxd), (0, 0)))

    # Fold BN into the four separable-conv branches and stack them.
    wdw_l, b1_l, wpw_l, b2_l = [], [], [], []
    for br in range(len(dils)):
        g1, b1, m1, v1 = params["dil_bn1"][br]
        s1 = g1 / jnp.sqrt(v1 + eps)
        wdw = jnp.transpose(params["dil_dw"][br][:, 0], (1, 2, 0)) * s1
        wdw_l.append(wdw.reshape(9, c3w))
        b1_l.append((b1 - m1 * s1)[None, :])
        g2, b2, m2, v2 = params["dil_bn2"][br]
        s2 = g2 / jnp.sqrt(v2 + eps)
        wpw_l.append(jnp.transpose(params["dil_pw"][br][:, :, 0, 0], (1, 0)) * s2)
        b2_l.append((b2 - m2 * s2)[None, :])
    wdw_all = jnp.stack(wdw_l)              # (4, 9, 3w)
    b1_all = jnp.stack(b1_l)                # (4, 1, 3w)
    wpw_all = jnp.stack(wpw_l)              # (4, 3w, w)
    b2_all = jnp.stack(b2_l)                # (4, 1, w)

    out_flat = pl.pallas_call(
        functools.partial(_dilated_sepconv_kernel, H=H, W=W, pad=maxd, dils=dils),
        out_shape=jax.ShapeDtypeStruct((B, H * W, 4 * width), jnp.float32),
        grid_spec=pltpu.PrefetchScalarGridSpec(
            num_scalar_prefetch=0,
            grid=(B,),
            in_specs=[
                pl.BlockSpec((4, 9, c3w), lambda i: (0, 0, 0)),
                pl.BlockSpec((4, 1, c3w), lambda i: (0, 0, 0)),
                pl.BlockSpec((4, c3w, width), lambda i: (0, 0, 0)),
                pl.BlockSpec((4, 1, width), lambda i: (0, 0, 0)),
                pl.BlockSpec((1, H + 2 * maxd, W + 2 * maxd, c3w),
                             lambda i: (i, 0, 0, 0)),
            ],
            out_specs=pl.BlockSpec((1, H * W, 4 * width), lambda i: (i, 0, 0)),
        ),
        compiler_params=pltpu.CompilerParams(dimension_semantics=("parallel",)),
    )(wdw_all, b1_all, wpw_all, b2_all, feat_pad)

    out = out_flat.reshape(B, H, W, 4 * width)
    return jnp.transpose(out, (0, 3, 1, 2))                  # NCHW


# ----------------------------------------------------------------------------
# Pure-JAX reference (PyTorch semantics, inference-mode BN)
# ----------------------------------------------------------------------------
def _bn_ref(x, bn, eps=1e-5):
    g, b, m, v = bn
    return (x - m) / jnp.sqrt(v + eps) * g + b


def _bilinear_ref(x, Ho, Wo):
    Bb, Hs, Ws, C = x.shape

    def coords(o, s):
        if o == 1 or s == 1:
            z = jnp.zeros((o,), jnp.int32)
            return z, z, jnp.zeros((o,), jnp.float32)
        src = jnp.arange(o, dtype=jnp.float32) * ((s - 1) / (o - 1))
        p0 = jnp.clip(jnp.floor(src), 0, s - 1).astype(jnp.int32)
        p1 = jnp.minimum(p0 + 1, s - 1)
        return p0, p1, src - p0.astype(jnp.float32)

    y0, y1, fy = coords(Ho, Hs)
    x0, x1, fx = coords(Wo, Ws)
    fy = fy[None, :, None, None]
    fx = fx[None, None, :, None]
    r0 = x[:, y0, :, :]
    r1 = x[:, y1, :, :]
    top = r0[:, :, x0, :] * (1 - fx) + r0[:, :, x1, :] * fx
    bot = r1[:, :, x0, :] * (1 - fx) + r1[:, :, x1, :] * fx
    return top * (1 - fy) + bot * fy


def jpu_ref(params, x3, x4, x5, width):
    dils = (1, 2, 4, 8)

    def head(x_nchw, name):
        x = jnp.transpose(x_nchw, (0, 2, 3, 1)).astype(jnp.float32)
        w = jnp.transpose(params[name + "_w"], (2, 3, 1, 0))   # HWIO
        y = lax.conv_general_dilated(
            x, w, (1, 1), ((1, 1), (1, 1)),
            dimension_numbers=("NHWC", "HWIO", "NHWC"),
            precision=lax.Precision.HIGHEST)
        return jnp.maximum(_bn_ref(y, params[name + "_bn"]), 0.0)

    f5, f4, f3 = head(x5, "conv5"), head(x4, "conv4"), head(x3, "conv3")
    H, W = f3.shape[1], f3.shape[2]
    feat = jnp.concatenate(
        [_bilinear_ref(f5, H, W), _bilinear_ref(f4, H, W), f3], axis=-1)

    outs = []
    for br, d in enumerate(dils):
        w_dw = jnp.transpose(params["dil_dw"][br], (2, 3, 1, 0))  # (3,3,1,3w)
        h = lax.conv_general_dilated(
            feat, w_dw, (1, 1), ((d, d), (d, d)), rhs_dilation=(d, d),
            feature_group_count=feat.shape[-1],
            dimension_numbers=("NHWC", "HWIO", "NHWC"),
            precision=lax.Precision.HIGHEST)
        h = _bn_ref(h, params["dil_bn1"][br])
        wp = params["dil_pw"][br][:, :, 0, 0]                    # (w, 3w)
        y = jnp.einsum("bhwc,oc->bhwo", h, wp,
                       precision=lax.Precision.HIGHEST)
        y = _bn_ref(y, params["dil_bn2"][br])
        outs.append(jnp.maximum(y, 0.0))
    return jnp.transpose(jnp.concatenate(outs, axis=-1), (0, 3, 1, 2))


# ----------------------------------------------------------------------------
# Parameter init (PyTorch layouts)
# ----------------------------------------------------------------------------
def _bn_params(key, c):
    k1, k2, k3, k4 = jax.random.split(key, 4)
    return (1.0 + 0.1 * jax.random.normal(k1, (c,), jnp.float32),
            0.1 * jax.random.normal(k2, (c,), jnp.float32),
            0.1 * jax.random.normal(k3, (c,), jnp.float32),
            0.5 + jax.random.uniform(k4, (c,), jnp.float32))


def init_jpu_params(key, in_channels, width):
    c3, c4, c5 = in_channels
    keys = jax.random.split(key, 32)
    p = {}
    for idx, (name, cin) in enumerate((("conv5", c5), ("conv4", c4), ("conv3", c3))):
        p[name + "_w"] = (jax.random.normal(keys[2 * idx], (width, cin, 3, 3),
                                            jnp.float32) / (9.0 * cin) ** 0.5)
        p[name + "_bn"] = _bn_params(keys[2 * idx + 1], width)
    dw_w, dw_bn, pw_w, out_bn = [], [], [], []
    kk = 6
    for _ in range(4):
        dw_w.append(jax.random.normal(keys[kk], (3 * width, 1, 3, 3),
                                      jnp.float32) / 3.0); kk += 1
        dw_bn.append(_bn_params(keys[kk], 3 * width)); kk += 1
        pw_w.append(jax.random.normal(keys[kk], (width, 3 * width, 1, 1),
                                      jnp.float32) / (3.0 * width) ** 0.5); kk += 1
        out_bn.append(_bn_params(keys[kk], width)); kk += 1
    p["dil_dw"], p["dil_bn1"], p["dil_pw"], p["dil_bn2"] = dw_w, dw_bn, pw_w, out_bn
    return p


if __name__ == "__main__":
    key = jax.random.PRNGKey(0)
    B = 2
    width = 16
    c3, c4, c5 = 16, 24, 32           # channels of inputs[-3], [-2], [-1]

    keys = jax.random.split(key, 4)
    x3 = jax.random.normal(keys[0], (B, c3, 16, 16), jnp.float32)  # inputs[-3]
    x4 = jax.random.normal(keys[1], (B, c4, 8, 8), jnp.float32)    # inputs[-2]
    x5 = jax.random.normal(keys[2], (B, c5, 8, 8), jnp.float32)    # inputs[-1]

    params = init_jpu_params(keys[3], (c3, c4, c5), width)

    out = jpu_forward(params, x3, x4, x5, width)
    out = jax.block_until_ready(out)

    ref = jpu_ref(params, x3, x4, x5, width)
    assert out.shape == (B, 4 * width, 16, 16)
    assert jnp.allclose(out, ref, atol=2e-3, rtol=2e-3), \
        float(jnp.max(jnp.abs(out - ref)))

    print("KERNEL_OK")
</pallas_src>

<mosaic_0001>
module attributes {stable_mosaic.version = 11 : i64} {
  func.func @_conv3x3_bn_relu_up_kernel(%arg0: i32, %arg1: memref<9x32x16xf32, #tpu.memory_space<vmem>>, %arg2: memref<1x16xf32, #tpu.memory_space<vmem>>, %arg3: memref<256x64xf32, #tpu.memory_space<vmem>>, %arg4: memref<1x10x10x32xf32, #tpu.memory_space<vmem>>, %arg5: memref<1x256x16xf32, #tpu.memory_space<vmem>>) attributes {dimension_semantics = [#tpu.dimension_semantics<parallel>], iteration_bounds = array<i64: 2>, scalar_prefetch = 0 : i64, scratch_operands = 0 : i64, tpu.core_type = #tpu.core_type<tc>, window_params = [{pipeline_mode = #tpu.pipeline_mode<synchronous>, transform_indices = @transform_0, window_bounds = array<i64: 9, 32, 16>}, {pipeline_mode = #tpu.pipeline_mode<synchronous>, transform_indices = @transform_1, window_bounds = array<i64: 1, 16>}, {pipeline_mode = #tpu.pipeline_mode<synchronous>, transform_indices = @transform_2, window_bounds = array<i64: 256, 64>}, {transform_indices = @transform_3, window_bounds = array<i64: 1, 10, 10, 32>}, {transform_indices = @transform_4, window_bounds = array<i64: 1, 256, 16>}]} {
    %cst = arith.constant 0.000000e+00 : f32
    %0 = vector.broadcast %cst : f32 to vector<64x16xf32>
    %c0 = arith.constant 0 : index
    %c0_0 = arith.constant 0 : index
    %c0_1 = arith.constant 0 : index
    %c0_2 = arith.constant 0 : index
    %1 = vector.load %arg4[%c0, %c0_0, %c0_1, %c0_2] : memref<1x10x10x32xf32, #tpu.memory_space<vmem>>, vector<1x8x8x32xf32>
    %2 = vector.shape_cast %1 : vector<1x8x8x32xf32> to vector<8x8x32xf32>
    %3 = vector.shape_cast %2 : vector<8x8x32xf32> to vector<64x32xf32>
    %c0_3 = arith.constant 0 : index
    %c0_4 = arith.constant 0 : index
    %c0_5 = arith.constant 0 : index
    %4 = vector.load %arg1[%c0_3, %c0_4, %c0_5] : memref<9x32x16xf32, #tpu.memory_space<vmem>>, vector<1x32x16xf32>
    %5 = vector.shape_cast %4 : vector<1x32x16xf32> to vector<32x16xf32>
    %cst_6 = arith.constant dense<0.000000e+00> : vector<64x16xf32>
    %6 = tpu.matmul %3, %5, %cst_6 {dimension_numbers = #tpu.dot_dimension_numbers<[1], [0], [0], [1], [0, 0, 1, 1], [], []>} : vector<64x32xf32>, vector<32x16xf32>, vector<64x16xf32> -> vector<64x16xf32>
    %7 = arith.addf %0, %6 : vector<64x16xf32>
    %c0_7 = arith.constant 0 : index
    %c0_8 = arith.constant 0 : index
    %c1 = arith.constant 1 : index
    %c0_9 = arith.constant 0 : index
    %8 = vector.load %arg4[%c0_7, %c0_8, %c1, %c0_9] : memref<1x10x10x32xf32, #tpu.memory_space<vmem>>, vector<1x8x8x32xf32>
    %9 = vector.shape_cast %8 : vector<1x8x8x32xf32> to vector<8x8x32xf32>
    %10 = vector.shape_cast %9 : vector<8x8x32xf32> to vector<64x32xf32>
    %c1_10 = arith.constant 1 : index
    %c0_11 = arith.constant 0 : index
    %c0_12 = arith.constant 0 : index
    %11 = vector.load %arg1[%c1_10, %c0_11, %c0_12] : memref<9x32x16xf32, #tpu.memory_space<vmem>>, vector<1x32x16xf32>
    %12 = vector.shape_cast %11 : vector<1x32x16xf32> to vector<32x16xf32>
    %cst_13 = arith.constant dense<0.000000e+00> : vector<64x16xf32>
    %13 = tpu.matmul %10, %12, %cst_13 {dimension_numbers = #tpu.dot_dimension_numbers<[1], [0], [0], [1], [0, 0, 1, 1], [], []>} : vector<64x32xf32>, vector<32x16xf32>, vector<64x16xf32> -> vector<64x16xf32>
    %14 = arith.addf %7, %13 : vector<64x16xf32>
    %c0_14 = arith.constant 0 : index
    %c0_15 = arith.constant 0 : index
    %c2 = arith.constant 2 : index
    %c0_16 = arith.constant 0 : index
    %15 = vector.load %arg4[%c0_14, %c0_15, %c2, %c0_16] : memref<1x10x10x32xf32, #tpu.memory_space<vmem>>, vector<1x8x8x32xf32>
    %16 = vector.shape_cast %15 : vector<1x8x8x32xf32> to vector<8x8x32xf32>
    %17 = vector.shape_cast %16 : vector<8x8x32xf32> to vector<64x32xf32>
    %c2_17 = arith.constant 2 : index
    %c0_18 = arith.constant 0 : index
    %c0_19 = arith.constant 0 : index
    %18 = vector.load %arg1[%c2_17, %c0_18, %c0_19] : memref<9x32x16xf32, #tpu.memory_space<vmem>>, vector<1x32x16xf32>
    %19 = vector.shape_cast %18 : vector<1x32x16xf32> to vector<32x16xf32>
    %cst_20 = arith.constant dense<0.000000e+00> : vector<64x16xf32>
    %20 = tpu.matmul %17, %19, %cst_20 {dimension_numbers = #tpu.dot_dimension_numbers<[1], [0], [0], [1], [0, 0, 1, 1], [], []>} : vector<64x32xf32>, vector<32x16xf32>, vector<64x16xf32> -> vector<64x16xf32>
    %21 = arith.addf %14, %20 : vector<64x16xf32>
    %c0_21 = arith.constant 0 : index
    %c1_22 = arith.constant 1 : index
    %c0_23 = arith.constant 0 : index
    %c0_24 = arith.constant 0 : index
    %22 = vector.load %arg4[%c0_21, %c1_22, %c0_23, %c0_24] : memref<1x10x10x32xf32, #tpu.memory_space<vmem>>, vector<1x8x8x32xf32>
    %23 = vector.shape_cast %22 : vector<1x8x8x32xf32> to vector<8x8x32xf32>
    %24 = vector.shape_cast %23 : vector<8x8x32xf32> to vector<64x32xf32>
    %c3 = arith.constant 3 : index
    %c0_25 = arith.constant 0 : index
    %c0_26 = arith.constant 0 : index
    %25 = vector.load %arg1[%c3, %c0_25, %c0_26] : memref<9x32x16xf32, #tpu.memory_space<vmem>>, vector<1x32x16xf32>
    %26 = vector.shape_cast %25 : vector<1x32x16xf32> to vector<32x16xf32>
    %cst_27 = arith.constant dense<0.000000e+00> : vector<64x16xf32>
    %27 = tpu.matmul %24, %26, %cst_27 {dimension_numbers = #tpu.dot_dimension_numbers<[1], [0], [0], [1], [0, 0, 1, 1], [], []>} : vector<64x32xf32>, vector<32x16xf32>, vector<64x16xf32> -> vector<64x16xf32>
    %28 = arith.addf %21, %27 : vector<64x16xf32>
    %c0_28 = arith.constant 0 : index
    %c1_29 = arith.constant 1 : index
    %c1_30 = arith.constant 1 : index
    %c0_31 = arith.constant 0 : index
    %29 = vector.load %arg4[%c0_28, %c1_29, %c1_30, %c0_31] : memref<1x10x10x32xf32, #tpu.memory_space<vmem>>, vector<1x8x8x32xf32>
    %30 = vector.shape_cast %29 : vector<1x8x8x32xf32> to vector<8x8x32xf32>
    %31 = vector.shape_cast %30 : vector<8x8x32xf32> to vector<64x32xf32>
    %c4 = arith.constant 4 : index
    %c0_32 = arith.constant 0 : index
    %c0_33 = arith.constant 0 : index
    %32 = vector.load %arg1[%c4, %c0_32, %c0_33] : memref<9x32x16xf32, #tpu.memory_space<vmem>>, vector<1x32x16xf32>
    %33 = vector.shape_cast %32 : vector<1x32x16xf32> to vector<32x16xf32>
    %cst_34 = arith.constant dense<0.000000e+00> : vector<64x16xf32>
    %34 = tpu.matmul %31, %33, %cst_34 {dimension_numbers = #tpu.dot_dimension_numbers<[1], [0], [0], [1], [0, 0, 1, 1], [], []>} : vector<64x32xf32>, vector<32x16xf32>, vector<64x16xf32> -> vector<64x16xf32>
    %35 = arith.addf %28, %34 : vector<64x16xf32>
    %c0_35 = arith.constant 0 : index
    %c1_36 = arith.constant 1 : index
    %c2_37 = arith.constant 2 : index
    %c0_38 = arith.constant 0 : index
    %36 = vector.load %arg4[%c0_35, %c1_36, %c2_37, %c0_38] : memref<1x10x10x32xf32, #tpu.memory_space<vmem>>, vector<1x8x8x32xf32>
    %37 = vector.shape_cast %36 : vector<1x8x8x32xf32> to vector<8x8x32xf32>
    %38 = vector.shape_cast %37 : vector<8x8x32xf32> to vector<64x32xf32>
    %c5 = arith.constant 5 : index
    %c0_39 = arith.constant 0 : index
    %c0_40 = arith.constant 0 : index
    %39 = vector.load %arg1[%c5, %c0_39, %c0_40] : memref<9x32x16xf32, #tpu.memory_space<vmem>>, vector<1x32x16xf32>
    %40 = vector.shape_cast %39 : vector<1x32x16xf32> to vector<32x16xf32>
    %cst_41 = arith.constant dense<0.000000e+00> : vector<64x16xf32>
    %41 = tpu.matmul %38, %40, %cst_41 {dimension_numbers = #tpu.dot_dimension_numbers<[1], [0], [0], [1], [0, 0, 1, 1], [], []>} : vector<64x32xf32>, vector<32x16xf32>, vector<64x16xf32> -> vector<64x16xf32>
    %42 = arith.addf %35, %41 : vector<64x16xf32>
    %c0_42 = arith.constant 0 : index
    %c2_43 = arith.constant 2 : index
    %c0_44 = arith.constant 0 : index
    %c0_45 = arith.constant 0 : index
    %43 = vector.load %arg4[%c0_42, %c2_43, %c0_44, %c0_45] : memref<1x10x10x32xf32, #tpu.memory_space<vmem>>, vector<1x8x8x32xf32>
    %44 = vector.shape_cast %43 : vector<1x8x8x32xf32> to vector<8x8x32xf32>
    %45 = vector.shape_cast %44 : vector<8x8x32xf32> to vector<64x32xf32>
    %c6 = arith.constant 6 : index
    %c0_46 = arith.constant 0 : index
    %c0_47 = arith.constant 0 : index
    %46 = vector.load %arg1[%c6, %c0_46, %c0_47] : memref<9x32x16xf32, #tpu.memory_space<vmem>>, vector<1x32x16xf32>
    %47 = vector.shape_cast %46 : vector<1x32x16xf32> to vector<32x16xf32>
    %cst_48 = arith.constant dense<0.000000e+00> : vector<64x16xf32>
    %48 = tpu.matmul %45, %47, %cst_48 {dimension_numbers = #tpu.dot_dimension_numbers<[1], [0], [0], [1], [0, 0, 1, 1], [], []>} : vector<64x32xf32>, vector<32x16xf32>, vector<64x16xf32> -> vector<64x16xf32>
    %49 = arith.addf %42, %48 : vector<64x16xf32>
    %c0_49 = arith.constant 0 : index
    %c2_50 = arith.constant 2 : index
    %c1_51 = arith.constant 1 : index
    %c0_52 = arith.constant 0 : index
    %50 = vector.load %arg4[%c0_49, %c2_50, %c1_51, %c0_52] : memref<1x10x10x32xf32, #tpu.memory_space<vmem>>, vector<1x8x8x32xf32>
    %51 = vector.shape_cast %50 : vector<1x8x8x32xf32> to vector<8x8x32xf32>
    %52 = vector.shape_cast %51 : vector<8x8x32xf32> to vector<64x32xf32>
    %c7 = arith.constant 7 : index
    %c0_53 = arith.constant 0 : index
    %c0_54 = arith.constant 0 : index
    %53 = vector.load %arg1[%c7, %c0_53, %c0_54] : memref<9x32x16xf32, #tpu.memory_space<vmem>>, vector<1x32x16xf32>
    %54 = vector.shape_cast %53 : vector<1x32x16xf32> to vector<32x16xf32>
    %cst_55 = arith.constant dense<0.000000e+00> : vector<64x16xf32>
    %55 = tpu.matmul %52, %54, %cst_55 {dimension_numbers = #tpu.dot_dimension_numbers<[1], [0], [0], [1], [0, 0, 1, 1], [], []>} : vector<64x32xf32>, vector<32x16xf32>, vector<64x16xf32> -> vector<64x16xf32>
    %56 = arith.addf %49, %55 : vector<64x16xf32>
    %c0_56 = arith.constant 0 : index
    %c2_57 = arith.constant 2 : index
    %c2_58 = arith.constant 2 : index
    %c0_59 = arith.constant 0 : index
    %57 = vector.load %arg4[%c0_56, %c2_57, %c2_58, %c0_59] : memref<1x10x10x32xf32, #tpu.memory_space<vmem>>, vector<1x8x8x32xf32>
    %58 = vector.shape_cast %57 : vector<1x8x8x32xf32> to vector<8x8x32xf32>
    %59 = vector.shape_cast %58 : vector<8x8x32xf32> to vector<64x32xf32>
    %c8 = arith.constant 8 : index
    %c0_60 = arith.constant 0 : index
    %c0_61 = arith.constant 0 : index
    %60 = vector.load %arg1[%c8, %c0_60, %c0_61] : memref<9x32x16xf32, #tpu.memory_space<vmem>>, vector<1x32x16xf32>
    %61 = vector.shape_cast %60 : vector<1x32x16xf32> to vector<32x16xf32>
    %cst_62 = arith.constant dense<0.000000e+00> : vector<64x16xf32>
    %62 = tpu.matmul %59, %61, %cst_62 {dimension_numbers = #tpu.dot_dimension_numbers<[1], [0], [0], [1], [0, 0, 1, 1], [], []>} : vector<64x32xf32>, vector<32x16xf32>, vector<64x16xf32> -> vector<64x16xf32>
    %63 = arith.addf %56, %62 : vector<64x16xf32>
    %c0_63 = arith.constant 0 : index
    %c0_64 = arith.constant 0 : index
    %64 = vector.load %arg2[%c0_63, %c0_64] : memref<1x16xf32, #tpu.memory_space<vmem>>, vector<1x16xf32>
    %65 = vector.broadcast %64 : vector<1x16xf32> to vector<64x16xf32>
    %66 = arith.addf %63, %65 : vector<64x16xf32>
    %cst_65 = arith.constant 0.000000e+00 : f32
    %67 = vector.broadcast %cst_65 : f32 to vector<64x16xf32>
    %68 = arith.maximumf %66, %67 : vector<64x16xf32>
    %c0_66 = arith.constant 0 : index
    %c0_67 = arith.constant 0 : index
    %69 = vector.load %arg3[%c0_66, %c0_67] : memref<256x64xf32, #tpu.memory_space<vmem>>, vector<256x64xf32>
    %cst_68 = arith.constant dense<0.000000e+00> : vector<256x16xf32>
    %70 = tpu.matmul %69, %68, %cst_68 {dimension_numbers = #tpu.dot_dimension_numbers<[1], [0], [0], [1], [0, 0, 1, 1], [], []>} : vector<256x64xf32>, vector<64x16xf32>, vector<256x16xf32> -> vector<256x16xf32>
    %c0_69 = arith.constant 0 : index
    %c0_70 = arith.constant 0 : index
    %c0_71 = arith.constant 0 : index
    %71 = vector.load %arg5[%c0_69, %c0_70, %c0_71] : memref<1x256x16xf32, #tpu.memory_space<vmem>>, vector<1x256x16xf32>
    %72 = vector.shape_cast %71 : vector<1x256x16xf32> to vector<256x16xf32>
    %73 = vector.shape_cast %70 : vector<256x16xf32> to vector<1x256x16xf32>
    tpu.vector_store %arg5[%c0_69, %c0_70, %c0_71], %73 {strides = array<i32>} : memref<1x256x16xf32, #tpu.memory_space<vmem>>, vector<1x256x16xf32>,
    return
  }
  func.func @transform_0(%arg0: i32) -> (i32, i32, i32) {
    %c0_i32 = arith.constant 0 : i32
    %c0_i32_0 = arith.constant 0 : i32
    %c0_i32_1 = arith.constant 0 : i32
    %c0_i32_2 = arith.constant 0 : i32
    return %c0_i32, %c0_i32_0, %c0_i32_1 : i32, i32, i32
  }
  func.func @transform_1(%arg0: i32) -> (i32, i32) {
    %c0_i32 = arith.constant 0 : i32
    %c0_i32_0 = arith.constant 0 : i32
    %c0_i32_1 = arith.constant 0 : i32
    return %c0_i32, %c0_i32_0 : i32, i32
  }
  func.func @transform_2(%arg0: i32) -> (i32, i32) {
    %c0_i32 = arith.constant 0 : i32
    %c0_i32_0 = arith.constant 0 : i32
    %c0_i32_1 = arith.constant 0 : i32
    return %c0_i32, %c0_i32_0 : i32, i32
  }
  func.func @transform_3(%arg0: i32) -> (i32, i32, i32, i32) {
    %c0_i32 = arith.constant 0 : i32
    %c0_i32_0 = arith.constant 0 : i32
    %c0_i32_1 = arith.constant 0 : i32
    %c0_i32_2 = arith.constant 0 : i32
    return %arg0, %c0_i32, %c0_i32_0, %c0_i32_1 : i32, i32, i32, i32
  }
  func.func @transform_4(%arg0: i32) -> (i32, i32, i32) {
    %c0_i32 = arith.constant 0 : i32
    %c0_i32_0 = arith.constant 0 : i32
    %c0_i32_1 = arith.constant 0 : i32
    return %arg0, %c0_i32, %c0_i32_0 : i32, i32, i32
  }
}

</mosaic_0001>

<llo_original>
// kernel: tpu_custom_call.1
$region0: #{tpu_custom_call.1}
  #allocation0 [shape = 'u32[]', space=smem, size = 0x4, offset = 0x4, fixed_abs, tag = 'smem constant byte address 0x4 - core index']
  #allocation1 [shape = 'u32[144,128]{1,0:T(1,128)}', space=vmem, size = 0x12000, scoped, tag = 'internal scratch']
  %s0 = inlined_call_operand.vmem [shape: f32[9,32,16], index: 0, kind: input, shape index: {}]
  %s1 = inlined_call_operand.vmem [shape: f32[1,16], index: 1, kind: input, shape index: {}]
  %s2 = inlined_call_operand.vmem [shape: f32[256,64], index: 2, kind: input, shape index: {}]
  %s3 = inlined_call_operand.vmem [shape: f32[2,10,10,32], index: 3, kind: input, shape index: {}]
  %s4 = inlined_call_operand.vmem [shape: f32[2,256,16], index: 4, kind: output, shape index: {}]
  %s5 = sld [smem:[#allocation0]]
  $region49: #{tpu_custom_call.1} parent=0
    _
  %s7 = ssub.s32 1, %s5
  %s8 = scalar_select 0, %s7, %s5
  loop: start=0, step=1, limit=4
  $region2: #{tpu_custom_call.1} parent=0 // loop_pre_header
    _
  $region3: #{tpu_custom_call.1} parent=0 // loop_header
    %s10 = sphi 0, %s14
    %p11 = scmp.ge.s32.totalorder %s10, 4
    %s18 = sphi 0, %s18
    %s20 = sphi 0, %s18
    %s21 = sphi 0, %s20
    %s35 = sphi 0, %s21
    %s39 = sphi 0, %s39
    %s41 = sphi 0, %s39
    %s42 = sphi 0, %s41
    %s56 = sphi 0, %s42
    %s60 = sphi 0, %s60
    %s62 = sphi 0, %s60
    %s63 = sphi 0, %s62
    %s77 = sphi 0, %s63
    %s83 = sphi 0, %s85
    %s86 = sphi 0, %s83
    %s87 = sphi 0, %s86
    %s103 = sphi 0, %s87
    %s109 = sphi 0, %s111
    %s112 = sphi 0, %s109
    %s113 = sphi 0, %s112
    %s129 = sphi 0, %s113
  $region4: #{tpu_custom_call.1} parent=0 // loop_header_branch
    %13 = sbr.rel (%p11) target = $region8
  $region5: #{tpu_custom_call.1} parent=0 // loop_body
    %s15 = ssub.s32 %s10, 1
    %s16 = ssub.s32 %s10, 2
    %s17 = sadd.s32 %s10, 1
    %s19 = sadd.s32 %s18, 1
    %p22 = scmp.eq.s32.totalorder %s10, 1
    %p23 = scmp.ne.s32.totalorder %s18, %s20
    %p24 = scmp.eq.s32.totalorder %s10, 0
    %p25 = por %p23, %p24
    %p26 = scmp.ne.s32.totalorder %s18, %s20
    %p27 = scmp.eq.s32.totalorder %s15, 1
    %p28 = por %p26, %p27
    %p29 = scmp.ne.s32.totalorder %s20, %s21
    %p30 = scmp.eq.s32.totalorder %s15, 0
    %p31 = por %p29, %p30
    %p32 = scmp.ne.s32.totalorder %s20, %s21
    %p33 = scmp.eq.s32.totalorder %s16, 1
    %p34 = por %p32, %p33
    %p36 = scmp.ne.s32.totalorder %s21, %s35
    %p37 = scmp.eq.s32.totalorder %s16, 0
    %p38 = por %p36, %p37
    %s40 = sadd.s32 %s39, 1
    %p43 = scmp.eq.s32.totalorder %s10, 1
    %p44 = scmp.ne.s32.totalorder %s39, %s41
    %p45 = scmp.eq.s32.totalorder %s10, 0
    %p46 = por %p44, %p45
    %p47 = scmp.ne.s32.totalorder %s39, %s41
    %p48 = scmp.eq.s32.totalorder %s15, 1
    %p49 = por %p47, %p48
    %p50 = scmp.ne.s32.totalorder %s41, %s42
    %p51 = scmp.eq.s32.totalorder %s15, 0
    %p52 = por %p50, %p51
    %p53 = scmp.ne.s32.totalorder %s41, %s42
    %p54 = scmp.eq.s32.totalorder %s16, 1
    %p55 = por %p53, %p54
    %p57 = scmp.ne.s32.totalorder %s42, %s56
    %p58 = scmp.eq.s32.totalorder %s16, 0
    %p59 = por %p57, %p58
    %s61 = sadd.s32 %s60, 1
    %p64 = scmp.eq.s32.totalorder %s10, 1
    %p65 = scmp.ne.s32.totalorder %s60, %s62
    %p66 = scmp.eq.s32.totalorder %s10, 0
    %p67 = por %p65, %p66
    %p68 = scmp.ne.s32.totalorder %s60, %s62
    %p69 = scmp.eq.s32.totalorder %s15, 1
    %p70 = por %p68, %p69
    %p71 = scmp.ne.s32.totalorder %s62, %s63
    %p72 = scmp.eq.s32.totalorder %s15, 0
    %p73 = por %p71, %p72
    %p74 = scmp.ne.s32.totalorder %s62, %s63
    %p75 = scmp.eq.s32.totalorder %s16, 1
    %p76 = por %p74, %p75
    %p78 = scmp.ne.s32.totalorder %s63, %s77
    %p79 = scmp.eq.s32.totalorder %s16, 0
    %p80 = por %p78, %p79
    %s81 = ssub.s32 %s10, %s17
    %p82 = scmp.eq.s32.totalorder %s81, 0
    %s84 = sadd.s32 %s83, 1
    %s85 = scalar_select %p82, %s83, %s84
    %p88 = pneg %p82
    %p89 = scmp.eq.s32.totalorder %s10, 1
    %p90 = por %p88, %p89
    %p91 = scmp.ne.s32.totalorder %s83, %s86
    %p92 = scmp.eq.s32.totalorder %s10, 0
    %p93 = por %p91, %p92
    %p94 = scmp.ne.s32.totalorder %s83, %s86
    %p95 = scmp.eq.s32.totalorder %s15, 1
    %p96 = por %p94, %p95
    %p97 = scmp.ne.s32.totalorder %s86, %s87
    %p98 = scmp.eq.s32.totalorder %s15, 0
    %p99 = por %p97, %p98
    %p100 = scmp.ne.s32.totalorder %s86, %s87
    %p101 = scmp.eq.s32.totalorder %s16, 1
    %p102 = por %p100, %p101
    %p104 = scmp.ne.s32.totalorder %s87, %s103
    %p105 = scmp.eq.s32.totalorder %s16, 0
    %p106 = por %p104, %p105
    %s107 = ssub.s32 %s10, %s17
    %p108 = scmp.eq.s32.totalorder %s107, 0
    %s110 = sadd.s32 %s109, 1
    %s111 = scalar_select %p108, %s109, %s110
    %p114 = pneg %p108
    %p115 = scmp.eq.s32.totalorder %s10, 1
    %p116 = por %p114, %p115
    %p117 = scmp.ne.s32.totalorder %s109, %s112
    %p118 = scmp.eq.s32.totalorder %s10, 0
    %p119 = por %p117, %p118
    %p120 = scmp.ne.s32.totalorder %s109, %s112
    %p121 = scmp.eq.s32.totalorder %s15, 1
    %p122 = por %p120, %p121
    %p123 = scmp.ne.s32.totalorder %s112, %s113
    %p124 = scmp.eq.s32.totalorder %s15, 0
    %p125 = por %p123, %p124
    %p126 = scmp.ne.s32.totalorder %s112, %s113
    %p127 = scmp.eq.s32.totalorder %s16, 1
    %p128 = por %p126, %p127
    %p130 = scmp.ne.s32.totalorder %s113, %s129
    %p131 = scmp.eq.s32.totalorder %s16, 0
    %p132 = por %p130, %p131
    %p133 = scmp.le.s32.totalorder 1, %s10
    %p134 = scmp.lt.s32.totalorder %s10, 3
    %p135 = pnand %p133, %p134
    %p136 = pneg %p135
    // Predicated region
    $region9: #{tpu_custom_call.1} parent=5 // pred_check
      _
    $region10: #{tpu_custom_call.1} parent=5 // pred_check_branch
      %138 = sbr.rel (%p135) target = $region12
    $region11: #{tpu_custom_call.1} parent=5 // pred_region
      %s139 = ssub.s32 %s10, 1
      // Predicated region
      $region13: #{tpu_custom_call.1} parent=11 // pred_check
        %p140 = pneg %p31
      $region14: #{tpu_custom_call.1} parent=11 // pred_check_branch
        %142 = sbr.rel (%p140) target = $region16
      $region15: #{tpu_custom_call.1} parent=11 // pred_region
        _
      $region16: #{tpu_custom_call.1} parent=11 // pred_fallthru
        _
      // Predicated region
      $region17: #{tpu_custom_call.1} parent=11 // pred_check
        %p143 = pneg %p52
      $region18: #{tpu_custom_call.1} parent=11 // pred_check_branch
        %145 = sbr.rel (%p143) target = $region20
      $region19: #{tpu_custom_call.1} parent=11 // pred_region
        _
      $region20: #{tpu_custom_call.1} parent=11 // pred_fallthru
        _
      // Predicated region
      $region21: #{tpu_custom_call.1} parent=11 // pred_check
        %p146 = pneg %p73
      $region22: #{tpu_custom_call.1} parent=11 // pred_check_branch
        %148 = sbr.rel (%p146) target = $region24
      $region23: #{tpu_custom_call.1} parent=11 // pred_region
        _
      $region24: #{tpu_custom_call.1} parent=11 // pred_fallthru
        _
    $region12: #{tpu_custom_call.1} parent=5 // pred_fallthru
      _
    %p149 = scmp.lt.s32.totalorder %s10, 2
    // Predicated region
    $region25: #{tpu_custom_call.1} parent=5 // pred_check
      %p150 = pneg %p149
    $region26: #{tpu_custom_call.1} parent=5 // pred_check_branch
      %152 = sbr.rel (%p150) target = $region28
    $region27: #{tpu_custom_call.1} parent=5 // pred_region
      // Predicated region
      $region29: #{tpu_custom_call.1} parent=27 // pred_check
        %p153 = pneg %p93
      $region30: #{tpu_custom_call.1} parent=27 // pred_check_branch
        %155 = sbr.rel (%p153) target = $region32
      $region31: #{tpu_custom_call.1} parent=27 // pred_region
        %p156 = scmp.lt.s32.totalorder %s10, 1
        %s157 = scalar_select %p156, %s10, 1
        %s158 = smul.addr %s157, 20
        %s159 = smul.addr %s158, 8
        %s160 = scalar_lea.vmem %s3, %s159
      $region32: #{tpu_custom_call.1} parent=27 // pred_fallthru
        _
    $region28: #{tpu_custom_call.1} parent=5 // pred_fallthru
      _
    %p161 = scmp.le.s32.totalorder 1, %s10
    %p162 = scmp.lt.s32.totalorder %s10, 3
    %p163 = pnand %p161, %p162
    %p164 = pneg %p163
    // Predicated region
    $region33: #{tpu_custom_call.1} parent=5 // pred_check
      _
    $region34: #{tpu_custom_call.1} parent=5 // pred_check_branch
      %166 = sbr.rel (%p163) target = $region36
    $region35: #{tpu_custom_call.1} parent=5 // pred_region
      %s167 = ssub.s32 %s10, 1
      %p168 = pneg %p31
      %p169 = pneg %p28
      %p170 = pneg %p52
      %p171 = pneg %p49
      %p172 = pneg %p73
      %p173 = pneg %p70
      %p174 = scmp.lt.s32.totalorder %s15, 1
      %s175 = scalar_select %p174, %s15, 1
      %s176 = smul.addr %s175, 20
      %s177 = smul.addr %s176, 8
      %s178 = scalar_lea.vmem %s3, %s177
      %p179 = pneg %p99
      %p180 = pneg %p96
      %p181 = pneg %p125
      %p182 = pneg %p122
      %p183 = scmp.lt.s32.totalorder %s15, 1
      %s184 = scalar_select %p183, %s15, 1
      %s185 = smul.addr %s184, 32
      %s186 = smul.addr %s185, 8
      %s187 = scalar_lea.vmem %s4, %s186
      %p188 = scmp.lt.s32.totalorder %s15, 1
      %s189 = scalar_select %p188, %s15, 1
      %s190 = smul.addr %s189, 20
      %s191 = smul.addr %s190, 8
      %s192 = scalar_lea.vmem %s3, %s191
      %p193 = scmp.lt.s32.totalorder %s15, 1
      %s194 = scalar_select %p193, %s15, 1
      %s195 = smul.addr %s194, 32
      %s196 = smul.addr %s195, 8
      %s197 = scalar_lea.vmem %s4, %s196
      %v198 = vld [vmem:[%s192] sm:$0xff]
      %v199 = vld [vmem:[%s192 + $0x10] sm:$0xff]
      %v200 = vld [vmem:[%s192 + $0x20] sm:$0xff]
      %v201 = vld [vmem:[%s192 + $0x30] sm:$0xff]
      %v202 = vld [vmem:[%s192 + $0x40] sm:$0xff]
      %v203 = vld [vmem:[%s192 + $0x50] sm:$0xff]
      %v204 = vld [vmem:[%s192 + $0x60] sm:$0xff]
      %v205 = vld [vmem:[%s192 + $0x70] sm:$0xff]
      %v206 = vld [vmem:[%s0] sm:$0xff]
      %v207 = vld [vmem:[%s0 + $0x8] sm:$0xff]
      %v208 = vld [vmem:[%s0 + $0x10] sm:$0xff]
      %v209 = vld [vmem:[%s0 + $0x18] sm:$0xff]
      %v210 = vld [vmem:[%s192 + $0x1] sm:$0xff]
      %v211 = vld [vmem:[%s192 + $0x11] sm:$0xff]
      %v212 = vld [vmem:[%s192 + $0x21] sm:$0xff]
      %v213 = vld [vmem:[%s192 + $0x31] sm:$0xff]
      %v214 = vld [vmem:[%s192 + $0x41] sm:$0xff]
      %v215 = vld [vmem:[%s192 + $0x51] sm:$0xff]
      %v216 = vld [vmem:[%s192 + $0x61] sm:$0xff]
      %v217 = vld [vmem:[%s192 + $0x71] sm:$0xff]
      %s218 = scalar_lea.vmem %s0, 32
      %v219 = vld [vmem:[%s218] sm:$0xff]
      %v220 = vld [vmem:[%s218 + $0x8] sm:$0xff]
      %v221 = vld [vmem:[%s218 + $0x10] sm:$0xff]
      %v222 = vld [vmem:[%s218 + $0x18] sm:$0xff]
      %vm223 = vcmask 261120
      %v225 = vsel %vm223, %v210, 0
      %v228 = vsel %vm223, %v211, 0
      %v231 = vsel %vm223, %v212, 0
      %v234 = vsel %vm223, %v213, 0
      %v237 = vsel %vm223, %v214, 0
      %v240 = vsel %vm223, %v215, 0
      %v243 = vsel %vm223, %v216, 0
      %v246 = vsel %vm223, %v217, 0
      %248 = vmatprep.subr.mxu0 0.0
      %249 = vmatpush1.msra.mxu0 %v219
      %250 = vmatprep.subr.mxu0 0.0
      %251 = vmatpush1.msra.mxu0 %v220
      %252 = vmatprep.subr.mxu0 0.0
      %253 = vmatpush1.msra.mxu0 %v221
      %254 = vmatprep.subr.mxu0 0.0
      %255 = vmatpush1.msra.mxu0 %v222
      %256 = vmatprep.subr.mxu0 0.0
      %257 = vmatpush1.msra.mxu0 0.0
      %258 = vmatprep.subr.mxu0 0.0
      %259 = vmatpush1.msra.mxu0 0.0
      %260 = vmatprep.subr.mxu0 0.0
      %261 = vmatpush1.msra.mxu0 0.0
      %262 = vmatprep.subr.mxu0 0.0
      %263 = vmatpush1.msra.mxu0 0.0
      %264 = vmatprep.subr.mxu0 0.0
      %265 = vmatpush1.msra.mxu0 0.0
      %266 = vmatprep.subr.mxu0 0.0
      %267 = vmatpush1.msra.mxu0 0.0
      %268 = vmatprep.subr.mxu0 0.0
      %269 = vmatpush1.msra.mxu0 0.0
      %270 = vmatprep.subr.mxu0 0.0
      %271 = vmatpush1.msra.mxu0 0.0
      %272 = vmatprep.subr.mxu0 0.0
      %273 = vmatpush1.msra.mxu0 0.0
      %274 = vmatprep.subr.mxu0 0.0
      %275 = vmatpush1.msra.mxu0 0.0
      %276 = vmatprep.subr.mxu0 0.0
      %277 = vmatpush1.msra.mxu0 0.0
      %278 = vmatprep.subr.mxu0 0.0
      %279 = vmatpush1.msra.mxu0 0.0
      %280 = vmatprep.subr.mxu0 0.0
      %281 = vmatpush1.msra.mxu0 0.0
      %282 = vmatprep.subr.mxu0 0.0
      %283 = vmatpush1.msra.mxu0 0.0
      %284 = vmatprep.subr.mxu0 0.0
      %285 = vmatpush1.msra.mxu0 0.0
      %286 = vmatprep.subr.mxu0 0.0
      %287 = vmatpush1.msra.mxu0 0.0
      %288 = vmatprep.subr.mxu0 0.0
      %289 = vmatpush1.msra.mxu0 0.0
      %290 = vmatprep.subr.mxu0 0.0
      %291 = vmatpush1.msra.mxu0 0.0
      %292 = vmatprep.subr.mxu0 0.0
      %293 = vmatpush1.msra.mxu0 0.0
      %294 = vmatprep.subr.mxu0 0.0
      %295 = vmatpush1.msra.mxu0 0.0
      %296 = vmatprep.subr.mxu0 0.0
      %297 = vmatpush1.msra.mxu0 0.0
      %298 = vmatprep.subr.mxu0 0.0
      %299 = vmatpush1.msra.mxu0 0.0
      %300 = vmatprep.subr.mxu0 0.0
      %301 = vmatpush1.msra.mxu0 0.0
      %302 = vmatprep.subr.mxu0 0.0
      %303 = vmatpush1.msra.mxu0 0.0
      %304 = vmatprep.subr.mxu0 0.0
      %305 = vmatpush1.msra.mxu0 0.0
      %306 = vmatprep.subr.mxu0 0.0
      %307 = vmatpush1.msra.mxu0 0.0
      %308 = vmatprep.subr.mxu0 0.0
      %309 = vmatpush1.msra.mxu0 0.0
      %310 = vmatprep.subr.mxu0 0.0
      %311 = vmatpush1.msra.mxu0 0.0
      %312 = vmatprep.mubr.f32.mxu0 0.0
      %313 = vmatmul.mubr.f32.gmra.mrb[0].mxu0 %v225
      %v314 = vpop.f32.mrb[0].mxu0
      %v315 = vadd.f32 0.0, %v314
      %v316 = vpop.f32.mrb[0].mxu0
      %317 = vmatprep.mubr.f32.mxu0 0.0
      %318 = vmatmul.mubr.f32.gmra.mrb[0].mxu0 %v228
      %v319 = vpop.f32.mrb[0].mxu0
      %v320 = vadd.f32 0.0, %v319
      %v321 = vpop.f32.mrb[0].mxu0
      %322 = vmatprep.mubr.f32.mxu0 0.0
      %323 = vmatmul.mubr.f32.gmra.mrb[0].mxu0 %v231
      %v324 = vpop.f32.mrb[0].mxu0
      %v325 = vadd.f32 0.0, %v324
      %v326 = vpop.f32.mrb[0].mxu0
      %327 = vmatprep.mubr.f32.mxu0 0.0
      %328 = vmatmul.mubr.f32.gmra.mrb[0].mxu0 %v234
      %v329 = vpop.f32.mrb[0].mxu0
      %v330 = vadd.f32 0.0, %v329
      %v331 = vpop.f32.mrb[0].mxu0
      %332 = vmatprep.mubr.f32.mxu0 0.0
      %333 = vmatmul.mubr.f32.gmra.mrb[0].mxu0 %v237
      %v334 = vpop.f32.mrb[0].mxu0
      %v335 = vadd.f32 0.0, %v334
      %v336 = vpop.f32.mrb[0].mxu0
      %337 = vmatprep.mubr.f32.mxu0 0.0
      %338 = vmatmul.mubr.f32.gmra.mrb[0].mxu0 %v240
      %v339 = vpop.f32.mrb[0].mxu0
      %v340 = vadd.f32 0.0, %v339
      %v341 = vpop.f32.mrb[0].mxu0
      %342 = vmatprep.mubr.f32.mxu0 0.0
      %343 = vmatmul.mubr.f32.gmra.mrb[0].mxu0 %v243
      %v344 = vpop.f32.mrb[0].mxu0
      %v345 = vadd.f32 0.0, %v344
      %v346 = vpop.f32.mrb[0].mxu0
      %347 = vmatprep.mubr.f32.mxu0 0.0
      %348 = vmatmul.mubr.f32.gmra.mrb[0].mxu0 %v246
      %v349 = vpop.f32.mrb[0].mxu0
      %v350 = vadd.f32 0.0, %v349
      %v351 = vpop.f32.mrb[0].mxu0
      %352 = vdwg.mxu0
      %v354 = vsel %vm223, %v198, 0
      %v357 = vsel %vm223, %v199, 0
      %v360 = vsel %vm223, %v200, 0
      %v363 = vsel %vm223, %v201, 0
      %v366 = vsel %vm223, %v202, 0
      %v369 = vsel %vm223, %v203, 0
      %v372 = vsel %vm223, %v204, 0
      %v375 = vsel %vm223, %v205, 0
      %377 = vmatprep.subr.mxu0 0.0
      %378 = vmatpush1.msra.mxu0 %v206
      %379 = vmatprep.subr.mxu0 0.0
      %380 = vmatpush1.msra.mxu0 %v207
      %381 = vmatprep.subr.mxu0 0.0
      %382 = vmatpush1.msra.mxu0 %v208
      %383 = vmatprep.subr.mxu0 0.0
      %384 = vmatpush1.msra.mxu0 %v209
      %385 = vmatprep.subr.mxu0 0.0
      %386 = vmatpush1.msra.mxu0 0.0
      %387 = vmatprep.subr.mxu0 0.0
      %388 = vmatpush1.msra.mxu0 0.0
      %389 = vmatprep.subr.mxu0 0.0
      %390 = vmatpush1.msra.mxu0 0.0
      %391 = vmatprep.subr.mxu0 0.0
      %392 = vmatpush1.msra.mxu0 0.0
      %393 = vmatprep.subr.mxu0 0.0
      %394 = vmatpush1.msra.mxu0 0.0
      %395 = vmatprep.subr.mxu0 0.0
      %396 = vmatpush1.msra.mxu0 0.0
      %397 = vmatprep.subr.mxu0 0.0
      %398 = vmatpush1.msra.mxu0 0.0
      %399 = vmatprep.subr.mxu0 0.0
      %400 = vmatpush1.msra.mxu0 0.0
      %401 = vmatprep.subr.mxu0 0.0
      %402 = vmatpush1.msra.mxu0 0.0
      %403 = vmatprep.subr.mxu0 0.0
      %404 = vmatpush1.msra.mxu0 0.0
      %405 = vmatprep.subr.mxu0 0.0
      %406 = vmatpush1.msra.mxu0 0.0
      %407 = vmatprep.subr.mxu0 0.0
      %408 = vmatpush1.msra.mxu0 0.0
      %409 = vmatprep.subr.mxu0 0.0
      %410 = vmatpush1.msra.mxu0 0.0
      %411 = vmatprep.subr.mxu0 0.0
      %412 = vmatpush1.msra.mxu0 0.0
      %413 = vmatprep.subr.mxu0 0.0
      %414 = vmatpush1.msra.mxu0 0.0
      %415 = vmatprep.subr.mxu0 0.0
      %416 = vmatpush1.msra.mxu0 0.0
      %417 = vmatprep.subr.mxu0 0.0
      %418 = vmatpush1.msra.mxu0 0.0
      %419 = vmatprep.subr.mxu0 0.0
      %420 = vmatpush1.msra.mxu0 0.0
      %421 = vmatprep.subr.mxu0 0.0
      %422 = vmatpush1.msra.mxu0 0.0
      %423 = vmatprep.subr.mxu0 0.0
      %424 = vmatpush1.msra.mxu0 0.0
      %425 = vmatprep.subr.mxu0 0.0
      %426 = vmatpush1.msra.mxu0 0.0
      %427 = vmatprep.subr.mxu0 0.0
      %428 = vmatpush1.msra.mxu0 0.0
      %429 = vmatprep.subr.mxu0 0.0
      %430 = vmatpush1.msra.mxu0 0.0
      %431 = vmatprep.subr.mxu0 0.0
      %432 = vmatpush1.msra.mxu0 0.0
      %433 = vmatprep.subr.mxu0 0.0
      %434 = vmatpush1.msra.mxu0 0.0
      %435 = vmatprep.subr.mxu0 0.0
      %436 = vmatpush1.msra.mxu0 0.0
      %437 = vmatprep.subr.mxu0 0.0
      %438 = vmatpush1.msra.mxu0 0.0
      %439 = vmatprep.subr.mxu0 0.0
      %440 = vmatpush1.msra.mxu0 0.0
      %441 = vmatprep.mubr.f32.mxu0 0.0
      %442 = vmatmul.mubr.f32.gmra.mrb[0].mxu0 %v354
      %v443 = vpop.f32.mrb[0].mxu0
      %v444 = vadd.f32 %v315, %v443
      %v445 = vpop.f32.mrb[0].mxu0
      %446 = vmatprep.mubr.f32.mxu0 0.0
      %447 = vmatmul.mubr.f32.gmra.mrb[0].mxu0 %v357
      %v448 = vpop.f32.mrb[0].mxu0
      %v449 = vadd.f32 %v320, %v448
      %v450 = vpop.f32.mrb[0].mxu0
      %451 = vmatprep.mubr.f32.mxu0 0.0
      %452 = vmatmul.mubr.f32.gmra.mrb[0].mxu0 %v360
      %v453 = vpop.f32.mrb[0].mxu0
      %v454 = vadd.f32 %v325, %v453
      %v455 = vpop.f32.mrb[0].mxu0
      %456 = vmatprep.mubr.f32.mxu0 0.0
      %457 = vmatmul.mubr.f32.gmra.mrb[0].mxu0 %v363
      %v458 = vpop.f32.mrb[0].mxu0
      %v459 = vadd.f32 %v330, %v458
      %v460 = vpop.f32.mrb[0].mxu0
      %461 = vmatprep.mubr.f32.mxu0 0.0
      %462 = vmatmul.mubr.f32.gmra.mrb[0].mxu0 %v366
      %v463 = vpop.f32.mrb[0].mxu0
      %v464 = vadd.f32 %v335, %v463
      %v465 = vpop.f32.mrb[0].mxu0
      %466 = vmatprep.mubr.f32.mxu0 0.0
      %467 = vmatmul.mubr.f32.gmra.mrb[0].mxu0 %v369
      %v468 = vpop.f32.mrb[0].mxu0
      %v469 = vadd.f32 %v340, %v468
      %v470 = vpop.f32.mrb[0].mxu0
      %471 = vmatprep.mubr.f32.mxu0 0.0
      %472 = vmatmul.mubr.f32.gmra.mrb[0].mxu0 %v372
      %v473 = vpop.f32.mrb[0].mxu0
      %v474 = vadd.f32 %v345, %v473
      %v475 = vpop.f32.mrb[0].mxu0
      %476 = vmatprep.mubr.f32.mxu0 0.0
      %477 = vmatmul.mubr.f32.gmra.mrb[0].mxu0 %v375
      %v478 = vpop.f32.mrb[0].mxu0
      %v479 = vadd.f32 %v350, %v478
      %v480 = vpop.f32.mrb[0].mxu0
      %481 = vdwg.mxu0
      %v482 = vld [vmem:[%s192 + $0x2] sm:$0xff]
      %v483 = vld [vmem:[%s192 + $0x12] sm:$0xff]
      %v484 = vld [vmem:[%s192 + $0x22] sm:$0xff]
      %v485 = vld [vmem:[%s192 + $0x32] sm:$0xff]
      %v486 = vld [vmem:[%s192 + $0x42] sm:$0xff]
      %v487 = vld [vmem:[%s192 + $0x52] sm:$0xff]
      %v488 = vld [vmem:[%s192 + $0x62] sm:$0xff]
      %v489 = vld [vmem:[%s192 + $0x72] sm:$0xff]
      %s490 = scalar_lea.vmem %s0, 64
      %v491 = vld [vmem:[%s490] sm:$0xff]
      %v492 = vld [vmem:[%s490 + $0x8] sm:$0xff]
      %v493 = vld [vmem:[%s490 + $0x10] sm:$0xff]
      %v494 = vld [vmem:[%s490 + $0x18] sm:$0xff]
      %v496 = vsel %vm223, %v482, 0
      %v499 = vsel %vm223, %v483, 0
      %v502 = vsel %vm223, %v484, 0
      %v505 = vsel %vm223, %v485, 0
      %v508 = vsel %vm223, %v486, 0
      %v511 = vsel %vm223, %v487, 0
      %v514 = vsel %vm223, %v488, 0
      %v517 = vsel %vm223, %v489, 0
      %519 = vmatprep.subr.mxu0 0.0
      %520 = vmatpush1.msra.mxu0 %v491
      %521 = vmatprep.subr.mxu0 0.0
      %522 = vmatpush1.msra.mxu0 %v492
      %523 = vmatprep.subr.mxu0 0.0
      %524 = vmatpush1.msra.mxu0 %v493
      %525 = vmatprep.subr.mxu0 0.0
      %526 = vmatpush1.msra.mxu0 %v494
      %527 = vmatprep.subr.mxu0 0.0
      %528 = vmatpush1.msra.mxu0 0.0
      %529 = vmatprep.subr.mxu0 0.0
      %530 = vmatpush1.msra.mxu0 0.0
      %531 = vmatprep.subr.mxu0 0.0
      %532 = vmatpush1.msra.mxu0 0.0
      %533 = vmatprep.subr.mxu0 0.0
      %534 = vmatpush1.msra.mxu0 0.0
      %535 = vmatprep.subr.mxu0 0.0
      %536 = vmatpush1.msra.mxu0 0.0
      %537 = vmatprep.subr.mxu0 0.0
      %538 = vmatpush1.msra.mxu0 0.0
      %539 = vmatprep.subr.mxu0 0.0
      %540 = vmatpush1.msra.mxu0 0.0
      %541 = vmatprep.subr.mxu0 0.0
      %542 = vmatpush1.msra.mxu0 0.0
      %543 = vmatprep.subr.mxu0 0.0
      %544 = vmatpush1.msra.mxu0 0.0
      %545 = vmatprep.subr.mxu0 0.0
      %546 = vmatpush1.msra.mxu0 0.0
      %547 = vmatprep.subr.mxu0 0.0
      %548 = vmatpush1.msra.mxu0 0.0
      %549 = vmatprep.subr.mxu0 0.0
      %550 = vmatpush1.msra.mxu0 0.0
      %551 = vmatprep.subr.mxu0 0.0
      %552 = vmatpush1.msra.mxu0 0.0
      %553 = vmatprep.subr.mxu0 0.0
      %554 = vmatpush1.msra.mxu0 0.0
      %555 = vmatprep.subr.mxu0 0.0
      %556 = vmatpush1.msra.mxu0 0.0
      %557 = vmatprep.subr.mxu0 0.0
      %558 = vmatpush1.msra.mxu0 0.0
      %559 = vmatprep.subr.mxu0 0.0
      %560 = vmatpush1.msra.mxu0 0.0
      %561 = vmatprep.subr.mxu0 0.0
      %562 = vmatpush1.msra.mxu0 0.0
      %563 = vmatprep.subr.mxu0 0.0
      %564 = vmatpush1.msra.mxu0 0.0
      %565 = vmatprep.subr.mxu0 0.0
      %566 = vmatpush1.msra.mxu0 0.0
      %567 = vmatprep.subr.mxu0 0.0
      %568 = vmatpush1.msra.mxu0 0.0
      %569 = vmatprep.subr.mxu0 0.0
      %570 = vmatpush1.msra.mxu0 0.0
      %571 = vmatprep.subr.mxu0 0.0
      %572 = vmatpush1.msra.mxu0 0.0
      %573 = vmatprep.subr.mxu0 0.0
      %574 = vmatpush1.msra.mxu0 0.0
      %575 = vmatprep.subr.mxu0 0.0
      %576 = vmatpush1.msra.mxu0 0.0
      %577 = vmatprep.subr.mxu0 0.0
      %578 = vmatpush1.msra.mxu0 0.0
      %579 = vmatprep.subr.mxu0 0.0
      %580 = vmatpush1.msra.mxu0 0.0
      %581 = vmatprep.subr.mxu0 0.0
      %582 = vmatpush1.msra.mxu0 0.0
      %583 = vmatprep.mubr.f32.mxu0 0.0
      %584 = vmatmul.mubr.f32.gmra.mrb[0].mxu0 %v496
      %v585 = vpop.f32.mrb[0].mxu0
      %v586 = vadd.f32 0.0, %v585
      %v587 = vpop.f32.mrb[0].mxu0
      %588 = vmatprep.mubr.f32.mxu0 0.0
      %589 = vmatmul.mubr.f32.gmra.mrb[0].mxu0 %v499
      %v590 = vpop.f32.mrb[0].mxu0
      %v591 = vadd.f32 0.0, %v590
      %v592 = vpop.f32.mrb[0].mxu0
      %593 = vmatprep.mubr.f32.mxu0 0.0
      %594 = vmatmul.mubr.f32.gmra.mrb[0].mxu0 %v502
      %v595 = vpop.f32.mrb[0].mxu0
      %v596 = vadd.f32 0.0, %v595
      %v597 = vpop.f32.mrb[0].mxu0
      %598 = vmatprep.mubr.f32.mxu0 0.0
      %599 = vmatmul.mubr.f32.gmra.mrb[0].mxu0 %v505
      %v600 = vpop.f32.mrb[0].mxu0
      %v601 = vadd.f32 0.0, %v600
      %v602 = vpop.f32.mrb[0].mxu0
      %603 = vmatprep.mubr.f32.mxu0 0.0
      %604 = vmatmul.mubr.f32.gmra.mrb[0].mxu0 %v508
      %v605 = vpop.f32.mrb[0].mxu0
      %v606 = vadd.f32 0.0, %v605
      %v607 = vpop.f32.mrb[0].mxu0
      %608 = vmatprep.mubr.f32.mxu0 0.0
      %609 = vmatmul.mubr.f32.gmra.mrb[0].mxu0 %v511
      %v610 = vpop.f32.mrb[0].mxu0
      %v611 = vadd.f32 0.0, %v610
      %v612 = vpop.f32.mrb[0].mxu0
      %613 = vmatprep.mubr.f32.mxu0 0.0
      %614 = vmatmul.mubr.f32.gmra.mrb[0].mxu0 %v514
      %v615 = vpop.f32.mrb[0].mxu0
      %v616 = vadd.f32 0.0, %v615
      %v617 = vpop.f32.mrb[0].mxu0
      %618 = vmatprep.mubr.f32.mxu0 0.0
      %619 = vmatmul.mubr.f32.gmra.mrb[0].mxu0 %v517
      %v620 = vpop.f32.mrb[0].mxu0
      %v621 = vadd.f32 0.0, %v620
      %v622 = vpop.f32.mrb[0].mxu0
      %623 = vdwg.mxu0
      %v624 = vadd.f32 %v444, %v586
      %v625 = vadd.f32 %v449, %v591
      %v626 = vadd.f32 %v454, %v596
      %v627 = vadd.f32 %v459, %v601
      %v628 = vadd.f32 %v464, %v606
      %v629 = vadd.f32 %v469, %v611
      %v630 = vadd.f32 %v474, %v616
      %v631 = vadd.f32 %v479, %v621
      %s632 = scalar_lea.vmem %s192, 16
      %v633 = vld [vmem:[%s632] sm:$0xff]
      %v634 = vld [vmem:[%s632 + $0x10] sm:$0xff]
      %v635 = vld [vmem:[%s632 + $0x20] sm:$0xff]
      %v636 = vld [vmem:[%s632 + $0x30] sm:$0xff]
      %v637 = vld [vmem:[%s632 + $0x40] sm:$0xff]
      %v638 = vld [vmem:[%s632 + $0x50] sm:$0xff]
      %v639 = vld [vmem:[%s632 + $0x60] sm:$0xff]
      %v640 = vld [vmem:[%s632 + $0x70] sm:$0xff]
      %s641 = scalar_lea.vmem %s0, 96
      %v642 = vld [vmem:[%s641] sm:$0xff]
      %v643 = vld [vmem:[%s641 + $0x8] sm:$0xff]
      %v644 = vld [vmem:[%s641 + $0x10] sm:$0xff]
      %v645 = vld [vmem:[%s641 + $0x18] sm:$0xff]
      %v647 = vsel %vm223, %v633, 0
      %v650 = vsel %vm223, %v634, 0
      %v653 = vsel %vm223, %v635, 0
      %v656 = vsel %vm223, %v636, 0
      %v659 = vsel %vm223, %v637, 0
      %v662 = vsel %vm223, %v638, 0
      %v665 = vsel %vm223, %v639, 0
      %v668 = vsel %vm223, %v640, 0
      %670 = vmatprep.subr.mxu0 0.0
      %671 = vmatpush1.msra.mxu0 %v642
      %672 = vmatprep.subr.mxu0 0.0
      %673 = vmatpush1.msra.mxu0 %v643
      %674 = vmatprep.subr.mxu0 0.0
      %675 = vmatpush1.msra.mxu0 %v644
      %676 = vmatprep.subr.mxu0 0.0
      %677 = vmatpush1.msra.mxu0 %v645
      %678 = vmatprep.subr.mxu0 0.0
      %679 = vmatpush1.msra.mxu0 0.0
      %680 = vmatprep.subr.mxu0 0.0
      %681 = vmatpush1.msra.mxu0 0.0
      %682 = vmatprep.subr.mxu0 0.0
      %683 = vmatpush1.msra.mxu0 0.0
      %684 = vmatprep.subr.mxu0 0.0
      %685 = vmatpush1.msra.mxu0 0.0
      %686 = vmatprep.subr.mxu0 0.0
      %687 = vmatpush1.msra.mxu0 0.0
      %688 = vmatprep.subr.mxu0 0.0
      %689 = vmatpush1.msra.mxu0 0.0
      %690 = vmatprep.subr.mxu0 0.0
      %691 = vmatpush1.msra.mxu0 0.0
      %692 = vmatprep.subr.mxu0 0.0
      %693 = vmatpush1.msra.mxu0 0.0
      %694 = vmatprep.subr.mxu0 0.0
      %695 = vmatpush1.msra.mxu0 0.0
      %696 = vmatprep.subr.mxu0 0.0
      %697 = vmatpush1.msra.mxu0 0.0
      %698 = vmatprep.subr.mxu0 0.0
      %699 = vmatpush1.msra.mxu0 0.0
      %700 = vmatprep.subr.mxu0 0.0
      %701 = vmatpush1.msra.mxu0 0.0
      %702 = vmatprep.subr.mxu0 0.0
      %703 = vmatpush1.msra.mxu0 0.0
      %704 = vmatprep.subr.mxu0 0.0
      %705 = vmatpush1.msra.mxu0 0.0
      %706 = vmatprep.subr.mxu0 0.0
      %707 = vmatpush1.msra.mxu0 0.0
      %708 = vmatprep.subr.mxu0 0.0
      %709 = vmatpush1.msra.mxu0 0.0
      %710 = vmatprep.subr.mxu0 0.0
      %711 = vmatpush1.msra.mxu0 0.0
      %712 = vmatprep.subr.mxu0 0.0
      %713 = vmatpush1.msra.mxu0 0.0
      %714 = vmatprep.subr.mxu0 0.0
      %715 = vmatpush1.msra.mxu0 0.0
      %716 = vmatprep.subr.mxu0 0.0
      %717 = vmatpush1.msra.mxu0 0.0
      %718 = vmatprep.subr.mxu0 0.0
      %719 = vmatpush1.msra.mxu0 0.0
      %720 = vmatprep.subr.mxu0 0.0
      %721 = vmatpush1.msra.mxu0 0.0
      %722 = vmatprep.subr.mxu0 0.0
      %723 = vmatpush1.msra.mxu0 0.0
      %724 = vmatprep.subr.mxu0 0.0
      %725 = vmatpush1.msra.mxu0 0.0
      %726 = vmatprep.subr.mxu0 0.0
      %727 = vmatpush1.msra.mxu0 0.0
      %728 = vmatprep.subr.mxu0 0.0
      %729 = vmatpush1.msra.mxu0 0.0
      %730 = vmatprep.subr.mxu0 0.0
      %731 = vmatpush1.msra.mxu0 0.0
      %732 = vmatprep.subr.mxu0 0.0
      %733 = vmatpush1.msra.mxu0 0.0
      %734 = vmatprep.mubr.f32.mxu0 0.0
      %735 = vmatmul.mubr.f32.gmra.mrb[0].mxu0 %v647
      %v736 = vpop.f32.mrb[0].mxu0
      %v737 = vadd.f32 0.0, %v736
      %v738 = vpop.f32.mrb[0].mxu0
      %739 = vmatprep.mubr.f32.mxu0 0.0
      %740 = vmatmul.mubr.f32.gmra.mrb[0].mxu0 %v650
      %v741 = vpop.f32.mrb[0].mxu0
      %v742 = vadd.f32 0.0, %v741
      %v743 = vpop.f32.mrb[0].mxu0
      %744 = vmatprep.mubr.f32.mxu0 0.0
      %745 = vmatmul.mubr.f32.gmra.mrb[0].mxu0 %v653
      %v746 = vpop.f32.mrb[0].mxu0
      %v747 = vadd.f32 0.0, %v746
      %v748 = vpop.f32.mrb[0].mxu0
      %749 = vmatprep.mubr.f32.mxu0 0.0
      %750 = vmatmul.mubr.f32.gmra.mrb[0].mxu0 %v656
      %v751 = vpop.f32.mrb[0].mxu0
      %v752 = vadd.f32 0.0, %v751
      %v753 = vpop.f32.mrb[0].mxu0
      %754 = vmatprep.mubr.f32.mxu0 0.0
      %755 = vmatmul.mubr.f32.gmra.mrb[0].mxu0 %v659
      %v756 = vpop.f32.mrb[0].mxu0
      %v757 = vadd.f32 0.0, %v756
      %v758 = vpop.f32.mrb[0].mxu0
      %759 = vmatprep.mubr.f32.mxu0 0.0
      %760 = vmatmul.mubr.f32.gmra.mrb[0].mxu0 %v662
      %v761 = vpop.f32.mrb[0].mxu0
      %v762 = vadd.f32 0.0, %v761
      %v763 = vpop.f32.mrb[0].mxu0
      %764 = vmatprep.mubr.f32.mxu0 0.0
      %765 = vmatmul.mubr.f32.gmra.mrb[0].mxu0 %v665
      %v766 = vpop.f32.mrb[0].mxu0
      %v767 = vadd.f32 0.0, %v766
      %v768 = vpop.f32.mrb[0].mxu0
      %769 = vmatprep.mubr.f32.mxu0 0.0
      %770 = vmatmul.mubr.f32.gmra.mrb[0].mxu0 %v668
      %v771 = vpop.f32.mrb[0].mxu0
      %v772 = vadd.f32 0.0, %v771
      %v773 = vpop.f32.mrb[0].mxu0
      %774 = vdwg.mxu0
      %v775 = vadd.f32 %v624, %v737
      %v776 = vadd.f32 %v625, %v742
      %v777 = vadd.f32 %v626, %v747
      %v778 = vadd.f32 %v627, %v752
      %v779 = vadd.f32 %v628, %v757
      %v780 = vadd.f32 %v629, %v762
      %v781 = vadd.f32 %v630, %v767
      %v782 = vadd.f32 %v631, %v772
      %v783 = vld [vmem:[%s632 + $0x1] sm:$0xff]
      %v784 = vld [vmem:[%s632 + $0x11] sm:$0xff]
      %v785 = vld [vmem:[%s632 + $0x21] sm:$0xff]
      %v786 = vld [vmem:[%s632 + $0x31] sm:$0xff]
      %v787 = vld [vmem:[%s632 + $0x41] sm:$0xff]
      %v788 = vld [vmem:[%s632 + $0x51] sm:$0xff]
      %v789 = vld [vmem:[%s632 + $0x61] sm:$0xff]
      %v790 = vld [vmem:[%s632 + $0x71] sm:$0xff]
      %s791 = scalar_lea.vmem %s0, 128
      %v792 = vld [vmem:[%s791] sm:$0xff]
      %v793 = vld [vmem:[%s791 + $0x8] sm:$0xff]
      %v794 = vld [vmem:[%s791 + $0x10] sm:$0xff]
      %v795 = vld [vmem:[%s791 + $0x18] sm:$0xff]
      %v797 = vsel %vm223, %v783, 0
      %v800 = vsel %vm223, %v784, 0
      %v803 = vsel %vm223, %v785, 0
      %v806 = vsel %vm223, %v786, 0
      %v809 = vsel %vm223, %v787, 0
      %v812 = vsel %vm223, %v788, 0
      %v815 = vsel %vm223, %v789, 0
      %v818 = vsel %vm223, %v790, 0
      %820 = vmatprep.subr.mxu0 0.0
      %821 = vmatpush1.msra.mxu0 %v792
      %822 = vmatprep.subr.mxu0 0.0
      %823 = vmatpush1.msra.mxu0 %v793
      %824 = vmatprep.subr.mxu0 0.0
      %825 = vmatpush1.msra.mxu0 %v794
      %826 = vmatprep.subr.mxu0 0.0
      %827 = vmatpush1.msra.mxu0 %v795
      %828 = vmatprep.subr.mxu0 0.0
      %829 = vmatpush1.msra.mxu0 0.0
      %830 = vmatprep.subr.mxu0 0.0
      %831 = vmatpush1.msra.mxu0 0.0
      %832 = vmatprep.subr.mxu0 0.0
      %833 = vmatpush1.msra.mxu0 0.0
      %834 = vmatprep.subr.mxu0 0.0
      %835 = vmatpush1.msra.mxu0 0.0
      %836 = vmatprep.subr.mxu0 0.0
      %837 = vmatpush1.msra.mxu0 0.0
      %838 = vmatprep.subr.mxu0 0.0
      %839 = vmatpush1.msra.mxu0 0.0
      %840 = vmatprep.subr.mxu0 0.0
      %841 = vmatpush1.msra.mxu0 0.0
      %842 = vmatprep.subr.mxu0 0.0
      %843 = vmatpush1.msra.mxu0 0.0
      %844 = vmatprep.subr.mxu0 0.0
      %845 = vmatpush1.msra.mxu0 0.0
      %846 = vmatprep.subr.mxu0 0.0
      %847 = vmatpush1.msra.mxu0 0.0
      %848 = vmatprep.subr.mxu0 0.0
      %849 = vmatpush1.msra.mxu0 0.0
      %850 = vmatprep.subr.mxu0 0.0
      %851 = vmatpush1.msra.mxu0 0.0
      %852 = vmatprep.subr.mxu0 0.0
      %853 = vmatpush1.msra.mxu0 0.0
      %854 = vmatprep.subr.mxu0 0.0
      %855 = vmatpush1.msra.mxu0 0.0
      %856 = vmatprep.subr.mxu0 0.0
      %857 = vmatpush1.msra.mxu0 0.0
      %858 = vmatprep.subr.mxu0 0.0
      %859 = vmatpush1.msra.mxu0 0.0
      %860 = vmatprep.subr.mxu0 0.0
      %861 = vmatpush1.msra.mxu0 0.0
      %862 = vmatprep.subr.mxu0 0.0
      %863 = vmatpush1.msra.mxu0 0.0
      %864 = vmatprep.subr.mxu0 0.0
      %865 = vmatpush1.msra.mxu0 0.0
      %866 = vmatprep.subr.mxu0 0.0
      %867 = vmatpush1.msra.mxu0 0.0
      %868 = vmatprep.subr.mxu0 0.0
      %869 = vmatpush1.msra.mxu0 0.0
      %870 = vmatprep.subr.mxu0 0.0
      %871 = vmatpush1.msra.mxu0 0.0
      %872 = vmatprep.subr.mxu0 0.0
      %873 = vmatpush1.msra.mxu0 0.0
      %874 = vmatprep.subr.mxu0 0.0
      %875 = vmatpush1.msra.mxu0 0.0
      %876 = vmatprep.subr.mxu0 0.0
      %877 = vmatpush1.msra.mxu0 0.0
      %878 = vmatprep.subr.mxu0 0.0
      %879 = vmatpush1.msra.mxu0 0.0
      %880 = vmatprep.subr.mxu0 0.0
      %881 = vmatpush1.msra.mxu0 0.0
      %882 = vmatprep.subr.mxu0 0.0
      %883 = vmatpush1.msra.mxu0 0.0
      %884 = vmatprep.mubr.f32.mxu0 0.0
      %885 = vmatmul.mubr.f32.gmra.mrb[0].mxu0 %v797
      %v886 = vpop.f32.mrb[0].mxu0
      %v887 = vadd.f32 0.0, %v886
      %v888 = vpop.f32.mrb[0].mxu0
      %889 = vmatprep.mubr.f32.mxu0 0.0
      %890 = vmatmul.mubr.f32.gmra.mrb[0].mxu0 %v800
      %v891 = vpop.f32.mrb[0].mxu0
      %v892 = vadd.f32 0.0, %v891
      %v893 = vpop.f32.mrb[0].mxu0
      %894 = vmatprep.mubr.f32.mxu0 0.0
      %895 = vmatmul.mubr.f32.gmra.mrb[0].mxu0 %v803
      %v896 = vpop.f32.mrb[0].mxu0
      %v897 = vadd.f32 0.0, %v896
      %v898 = vpop.f32.mrb[0].mxu0
      %899 = vmatprep.mubr.f32.mxu0 0.0
      %900 = vmatmul.mubr.f32.gmra.mrb[0].mxu0 %v806
      %v901 = vpop.f32.mrb[0].mxu0
      %v902 = vadd.f32 0.0, %v901
      %v903 = vpop.f32.mrb[0].mxu0
      %904 = vmatprep.mubr.f32.mxu0 0.0
      %905 = vmatmul.mubr.f32.gmra.mrb[0].mxu0 %v809
      %v906 = vpop.f32.mrb[0].mxu0
      %v907 = vadd.f32 0.0, %v906
      %v908 = vpop.f32.mrb[0].mxu0
      %909 = vmatprep.mubr.f32.mxu0 0.0
      %910 = vmatmul.mubr.f32.gmra.mrb[0].mxu0 %v812
      %v911 = vpop.f32.mrb[0].mxu0
      %v912 = vadd.f32 0.0, %v911
      %v913 = vpop.f32.mrb[0].mxu0
      %914 = vmatprep.mubr.f32.mxu0 0.0
      %915 = vmatmul.mubr.f32.gmra.mrb[0].mxu0 %v815
      %v916 = vpop.f32.mrb[0].mxu0
      %v917 = vadd.f32 0.0, %v916
      %v918 = vpop.f32.mrb[0].mxu0
      %919 = vmatprep.mubr.f32.mxu0 0.0
      %920 = vmatmul.mubr.f32.gmra.mrb[0].mxu0 %v818
      %v921 = vpop.f32.mrb[0].mxu0
      %v922 = vadd.f32 0.0, %v921
      %v923 = vpop.f32.mrb[0].mxu0
      %924 = vdwg.mxu0
      %v925 = vadd.f32 %v775, %v887
      %v926 = vadd.f32 %v776, %v892
      %v927 = vadd.f32 %v777, %v897
      %v928 = vadd.f32 %v778, %v902
      %v929 = vadd.f32 %v779, %v907
      %v930 = vadd.f32 %v780, %v912
      %v931 = vadd.f32 %v781, %v917
      %v932 = vadd.f32 %v782, %v922
      %v933 = vld [vmem:[%s632 + $0x2] sm:$0xff]
      %v934 = vld [vmem:[%s632 + $0x12] sm:$0xff]
      %v935 = vld [vmem:[%s632 + $0x22] sm:$0xff]
      %v936 = vld [vmem:[%s632 + $0x32] sm:$0xff]
      %v937 = vld [vmem:[%s632 + $0x42] sm:$0xff]
      %v938 = vld [vmem:[%s632 + $0x52] sm:$0xff]
      %v939 = vld [vmem:[%s632 + $0x62] sm:$0xff]
      %v940 = vld [vmem:[%s632 + $0x72] sm:$0xff]
      %s941 = scalar_lea.vmem %s0, 160
      %v942 = vld [vmem:[%s941] sm:$0xff]
      %v943 = vld [vmem:[%s941 + $0x8] sm:$0xff]
      %v944 = vld [vmem:[%s941 + $0x10] sm:$0xff]
      %v945 = vld [vmem:[%s941 + $0x18] sm:$0xff]
      %v947 = vsel %vm223, %v933, 0
      %v950 = vsel %vm223, %v934, 0
      %v953 = vsel %vm223, %v935, 0
      %v956 = vsel %vm223, %v936, 0
      %v959 = vsel %vm223, %v937, 0
      %v962 = vsel %vm223, %v938, 0
      %v965 = vsel %vm223, %v939, 0
      %v968 = vsel %vm223, %v940, 0
      %970 = vmatprep.subr.mxu0 0.0
      %971 = vmatpush1.msra.mxu0 %v942
      %972 = vmatprep.subr.mxu0 0.0
      %973 = vmatpush1.msra.mxu0 %v943
      %974 = vmatprep.subr.mxu0 0.0
      %975 = vmatpush1.msra.mxu0 %v944
      %976 = vmatprep.subr.mxu0 0.0
      %977 = vmatpush1.msra.mxu0 %v945
      %978 = vmatprep.subr.mxu0 0.0
      %979 = vmatpush1.msra.mxu0 0.0
      %980 = vmatprep.subr.mxu0 0.0
      %981 = vmatpush1.msra.mxu0 0.0
      %982 = vmatprep.subr.mxu0 0.0
      %983 = vmatpush1.msra.mxu0 0.0
      %984 = vmatprep.subr.mxu0 0.0
      %985 = vmatpush1.msra.mxu0 0.0
      %986 = vmatprep.subr.mxu0 0.0
      %987 = vmatpush1.msra.mxu0 0.0
      %988 = vmatprep.subr.mxu0 0.0
      %989 = vmatpush1.msra.mxu0 0.0
      %990 = vmatprep.subr.mxu0 0.0
      %991 = vmatpush1.msra.mxu0 0.0
      %992 = vmatprep.subr.mxu0 0.0
      %993 = vmatpush1.msra.mxu0 0.0
      %994 = vmatprep.subr.mxu0 0.0
      %995 = vmatpush1.msra.mxu0 0.0
      %996 = vmatprep.subr.mxu0 0.0
      %997 = vmatpush1.msra.mxu0 0.0
      %998 = vmatprep.subr.mxu0 0.0
      %999 = vmatpush1.msra.mxu0 0.0
      %1000 = vmatprep.subr.mxu0 0.0
      %1001 = vmatpush1.msra.mxu0 0.0
      %1002 = vmatprep.subr.mxu0 0.0
      %1003 = vmatpush1.msra.mxu0 0.0
      %1004 = vmatprep.subr.mxu0 0.0
      %1005 = vmatpush1.msra.mxu0 0.0
      %1006 = vmatprep.subr.mxu0 0.0
      %1007 = vmatpush1.msra.mxu0 0.0
      %1008 = vmatprep.subr.mxu0 0.0
      %1009 = vmatpush1.msra.mxu0 0.0
      %1010 = vmatprep.subr.mxu0 0.0
      %1011 = vmatpush1.msra.mxu0 0.0
      %1012 = vmatprep.subr.mxu0 0.0
      %1013 = vmatpush1.msra.mxu0 0.0
      %1014 = vmatprep.subr.mxu0 0.0
      %1015 = vmatpush1.msra.mxu0 0.0
      %1016 = vmatprep.subr.mxu0 0.0
      %1017 = vmatpush1.msra.mxu0 0.0
      %1018 = vmatprep.subr.mxu0 0.0
      %1019 = vmatpush1.msra.mxu0 0.0
      %1020 = vmatprep.subr.mxu0 0.0
      %1021 = vmatpush1.msra.mxu0 0.0
      %1022 = vmatprep.subr.mxu0 0.0
      %1023 = vmatpush1.msra.mxu0 0.0
      %1024 = vmatprep.subr.mxu0 0.0
      %1025 = vmatpush1.msra.mxu0 0.0
      %1026 = vmatprep.subr.mxu0 0.0
      %1027 = vmatpush1.msra.mxu0 0.0
      %1028 = vmatprep.subr.mxu0 0.0
      %1029 = vmatpush1.msra.mxu0 0.0
      %1030 = vmatprep.subr.mxu0 0.0
      %1031 = vmatpush1.msra.mxu0 0.0
      %1032 = vmatprep.subr.mxu0 0.0
      %1033 = vmatpush1.msra.mxu0 0.0
      %1034 = vmatprep.mubr.f32.mxu0 0.0
      %1035 = vmatmul.mubr.f32.gmra.mrb[0].mxu0 %v947
      %v1036 = vpop.f32.mrb[0].mxu0
      %v1037 = vadd.f32 0.0, %v1036
      %v1038 = vpop.f32.mrb[0].mxu0
      %1039 = vmatprep.mubr.f32.mxu0 0.0
      %1040 = vmatmul.mubr.f32.gmra.mrb[0].mxu0 %v950
      %v1041 = vpop.f32.mrb[0].mxu0
      %v1042 = vadd.f32 0.0, %v1041
      %v1043 = vpop.f32.mrb[0].mxu0
      %1044 = vmatprep.mubr.f32.mxu0 0.0
      %1045 = vmatmul.mubr.f32.gmra.mrb[0].mxu0 %v953
      %v1046 = vpop.f32.mrb[0].mxu0
      %v1047 = vadd.f32 0.0, %v1046
      %v1048 = vpop.f32.mrb[0].mxu0
      %1049 = vmatprep.mubr.f32.mxu0 0.0
      %1050 = vmatmul.mubr.f32.gmra.mrb[0].mxu0 %v956
      %v1051 = vpop.f32.mrb[0].mxu0
      %v1052 = vadd.f32 0.0, %v1051
      %v1053 = vpop.f32.mrb[0].mxu0
      %1054 = vmatprep.mubr.f32.mxu0 0.0
      %1055 = vmatmul.mubr.f32.gmra.mrb[0].mxu0 %v959
      %v1056 = vpop.f32.mrb[0].mxu0
      %v1057 = vadd.f32 0.0, %v1056
      %v1058 = vpop.f32.mrb[0].mxu0
      %1059 = vmatprep.mubr.f32.mxu0 0.0
      %1060 = vmatmul.mubr.f32.gmra.mrb[0].mxu0 %v962
      %v1061 = vpop.f32.mrb[0].mxu0
      %v1062 = vadd.f32 0.0, %v1061
      %v1063 = vpop.f32.mrb[0].mxu0
      %1064 = vmatprep.mubr.f32.mxu0 0.0
      %1065 = vmatmul.mubr.f32.gmra.mrb[0].mxu0 %v965
      %v1066 = vpop.f32.mrb[0].mxu0
      %v1067 = vadd.f32 0.0, %v1066
      %v1068 = vpop.f32.mrb[0].mxu0
      %1069 = vmatprep.mubr.f32.mxu0 0.0
      %1070 = vmatmul.mubr.f32.gmra.mrb[0].mxu0 %v968
      %v1071 = vpop.f32.mrb[0].mxu0
      %v1072 = vadd.f32 0.0, %v1071
      %v1073 = vpop.f32.mrb[0].mxu0
      %1074 = vdwg.mxu0
      %v1075 = vadd.f32 %v925, %v1037
      %v1076 = vadd.f32 %v926, %v1042
      %v1077 = vadd.f32 %v927, %v1047
      %v1078 = vadd.f32 %v928, %v1052
      %v1079 = vadd.f32 %v929, %v1057
      %v1080 = vadd.f32 %v930, %v1062
      %v1081 = vadd.f32 %v931, %v1067
      %v1082 = vadd.f32 %v932, %v1072
      %s1083 = scalar_lea.vmem %s192, 32
      %v1084 = vld [vmem:[%s1083] sm:$0xff]
      %v1085 = vld [vmem:[%s1083 + $0x10] sm:$0xff]
      %v1086 = vld [vmem:[%s1083 + $0x20] sm:$0xff]
      %v1087 = vld [vmem:[%s1083 + $0x30] sm:$0xff]
      %v1088 = vld [vmem:[%s1083 + $0x40] sm:$0xff]
      %v1089 = vld [vmem:[%s1083 + $0x50] sm:$0xff]
      %v1090 = vld [vmem:[%s1083 + $0x60] sm:$0xff]
      %v1091 = vld [vmem:[%s1083 + $0x70] sm:$0xff]
      %s1092 = scalar_lea.vmem %s0, 192
      %v1093 = vld [vmem:[%s1092] sm:$0xff]
      %v1094 = vld [vmem:[%s1092 + $0x8] sm:$0xff]
      %v1095 = vld [vmem:[%s1092 + $0x10] sm:$0xff]
      %v1096 = vld [vmem:[%s1092 + $0x18] sm:$0xff]
      %v1098 = vsel %vm223, %v1084, 0
      %v1101 = vsel %vm223, %v1085, 0
      %v1104 = vsel %vm223, %v1086, 0
      %v1107 = vsel %vm223, %v1087, 0
      %v1110 = vsel %vm223, %v1088, 0
      %v1113 = vsel %vm223, %v1089, 0
      %v1116 = vsel %vm223, %v1090, 0
      %v1119 = vsel %vm223, %v1091, 0
      %1121 = vmatprep.subr.mxu0 0.0
      %1122 = vmatpush1.msra.mxu0 %v1093
      %1123 = vmatprep.subr.mxu0 0.0
      %1124 = vmatpush1.msra.mxu0 %v1094
      %1125 = vmatprep.subr.mxu0 0.0
      %1126 = vmatpush1.msra.mxu0 %v1095
      %1127 = vmatprep.subr.mxu0 0.0
      %1128 = vmatpush1.msra.mxu0 %v1096
      %1129 = vmatprep.subr.mxu0 0.0
      %1130 = vmatpush1.msra.mxu0 0.0
      %1131 = vmatprep.subr.mxu0 0.0
      %1132 = vmatpush1.msra.mxu0 0.0
      %1133 = vmatprep.subr.mxu0 0.0
      %1134 = vmatpush1.msra.mxu0 0.0
      %1135 = vmatprep.subr.mxu0 0.0
      %1136 = vmatpush1.msra.mxu0 0.0
      %1137 = vmatprep.subr.mxu0 0.0
      %1138 = vmatpush1.msra.mxu0 0.0
      %1139 = vmatprep.subr.mxu0 0.0
      %1140 = vmatpush1.msra.mxu0 0.0
      %1141 = vmatprep.subr.mxu0 0.0
      %1142 = vmatpush1.msra.mxu0 0.0
      %1143 = vmatprep.subr.mxu0 0.0
      %1144 = vmatpush1.msra.mxu0 0.0
      %1145 = vmatprep.subr.mxu0 0.0
      %1146 = vmatpush1.msra.mxu0 0.0
      %1147 = vmatprep.subr.mxu0 0.0
      %1148 = vmatpush1.msra.mxu0 0.0
      %1149 = vmatprep.subr.mxu0 0.0
      %1150 = vmatpush1.msra.mxu0 0.0
      %1151 = vmatprep.subr.mxu0 0.0
      %1152 = vmatpush1.msra.mxu0 0.0
      %1153 = vmatprep.subr.mxu0 0.0
      %1154 = vmatpush1.msra.mxu0 0.0
      %1155 = vmatprep.subr.mxu0 0.0
      %1156 = vmatpush1.msra.mxu0 0.0
      %1157 = vmatprep.subr.mxu0 0.0
      %1158 = vmatpush1.msra.mxu0 0.0
      %1159 = vmatprep.subr.mxu0 0.0
      %1160 = vmatpush1.msra.mxu0 0.0
      %1161 = vmatprep.subr.mxu0 0.0
      %1162 = vmatpush1.msra.mxu0 0.0
      %1163 = vmatprep.subr.mxu0 0.0
      %1164 = vmatpush1.msra.mxu0 0.0
      %1165 = vmatprep.subr.mxu0 0.0
      %1166 = vmatpush1.msra.mxu0 0.0
      %1167 = vmatprep.subr.mxu0 0.0
      %1168 = vmatpush1.msra.mxu0 0.0
      %1169 = vmatprep.subr.mxu0 0.0
      %1170 = vmatpush1.msra.mxu0 0.0
      %1171 = vmatprep.subr.mxu0 0.0
      %1172 = vmatpush1.msra.mxu0 0.0
      %1173 = vmatprep.subr.mxu0 0.0
      %1174 = vmatpush1.msra.mxu0 0.0
      %1175 = vmatprep.subr.mxu0 0.0
      %1176 = vmatpush1.msra.mxu0 0.0
      %1177 = vmatprep.subr.mxu0 0.0
      %1178 = vmatpush1.msra.mxu0 0.0
      %1179 = vmatprep.subr.mxu0 0.0
      %1180 = vmatpush1.msra.mxu0 0.0
      %1181 = vmatprep.subr.mxu0 0.0
      %1182 = vmatpush1.msra.mxu0 0.0
      %1183 = vmatprep.subr.mxu0 0.0
      %1184 = vmatpush1.msra.mxu0 0.0
      %1185 = vmatprep.mubr.f32.mxu0 0.0
      %1186 = vmatmul.mubr.f32.gmra.mrb[0].mxu0 %v1098
      %v1187 = vpop.f32.mrb[0].mxu0
      %v1188 = vadd.f32 0.0, %v1187
      %v1189 = vpop.f32.mrb[0].mxu0
      %1190 = vmatprep.mubr.f32.mxu0 0.0
      %1191 = vmatmul.mubr.f32.gmra.mrb[0].mxu0 %v1101
      %v1192 = vpop.f32.mrb[0].mxu0
      %v1193 = vadd.f32 0.0, %v1192
      %v1194 = vpop.f32.mrb[0].mxu0
      %1195 = vmatprep.mubr.f32.mxu0 0.0
      %1196 = vmatmul.mubr.f32.gmra.mrb[0].mxu0 %v1104
      %v1197 = vpop.f32.mrb[0].mxu0
      %v1198 = vadd.f32 0.0, %v1197
      %v1199 = vpop.f32.mrb[0].mxu0
      %1200 = vmatprep.mubr.f32.mxu0 0.0
      %1201 = vmatmul.mubr.f32.gmra.mrb[0].mxu0 %v1107
      %v1202 = vpop.f32.mrb[0].mxu0
      %v1203 = vadd.f32 0.0, %v1202
      %v1204 = vpop.f32.mrb[0].mxu0
      %1205 = vmatprep.mubr.f32.mxu0 0.0
      %1206 = vmatmul.mubr.f32.gmra.mrb[0].mxu0 %v1110
      %v1207 = vpop.f32.mrb[0].mxu0
      %v1208 = vadd.f32 0.0, %v1207
      %v1209 = vpop.f32.mrb[0].mxu0
      %1210 = vmatprep.mubr.f32.mxu0 0.0
      %1211 = vmatmul.mubr.f32.gmra.mrb[0].mxu0 %v1113
      %v1212 = vpop.f32.mrb[0].mxu0
      %v1213 = vadd.f32 0.0, %v1212
      %v1214 = vpop.f32.mrb[0].mxu0
      %1215 = vmatprep.mubr.f32.mxu0 0.0
      %1216 = vmatmul.mubr.f32.gmra.mrb[0].mxu0 %v1116
      %v1217 = vpop.f32.mrb[0].mxu0
      %v1218 = vadd.f32 0.0, %v1217
      %v1219 = vpop.f32.mrb[0].mxu0
      %1220 = vmatprep.mubr.f32.mxu0 0.0
      %1221 = vmatmul.mubr.f32.gmra.mrb[0].mxu0 %v1119
      %v1222 = vpop.f32.mrb[0].mxu0
      %v1223 = vadd.f32 0.0, %v1222
      %v1224 = vpop.f32.mrb[0].mxu0
      %1225 = vdwg.mxu0
      %v1226 = vadd.f32 %v1075, %v1188
      %v1227 = vadd.f32 %v1076, %v1193
      %v1228 = vadd.f32 %v1077, %v1198
      %v1229 = vadd.f32 %v1078, %v1203
      %v1230 = vadd.f32 %v1079, %v1208
      %v1231 = vadd.f32 %v1080, %v1213
      %v1232 = vadd.f32 %v1081, %v1218
      %v1233 = vadd.f32 %v1082, %v1223
      %v1234 = vld [vmem:[%s1083 + $0x1] sm:$0xff]
      %v1235 = vld [vmem:[%s1083 + $0x11] sm:$0xff]
      %v1236 = vld [vmem:[%s1083 + $0x21] sm:$0xff]
      %v1237 = vld [vmem:[%s1083 + $0x31] sm:$0xff]
      %v1238 = vld [vmem:[%s1083 + $0x41] sm:$0xff]
      %v1239 = vld [vmem:[%s1083 + $0x51] sm:$0xff]
      %v1240 = vld [vmem:[%s1083 + $0x61] sm:$0xff]
      %v1241 = vld [vmem:[%s1083 + $0x71] sm:$0xff]
      %s1242 = scalar_lea.vmem %s0, 224
      %v1243 = vld [vmem:[%s1242] sm:$0xff]
      %v1244 = vld [vmem:[%s1242 + $0x8] sm:$0xff]
      %v1245 = vld [vmem:[%s1242 + $0x10] sm:$0xff]
      %v1246 = vld [vmem:[%s1242 + $0x18] sm:$0xff]
      %v1248 = vsel %vm223, %v1234, 0
      %v1251 = vsel %vm223, %v1235, 0
      %v1254 = vsel %vm223, %v1236, 0
      %v1257 = vsel %vm223, %v1237, 0
      %v1260 = vsel %vm223, %v1238, 0
      %v1263 = vsel %vm223, %v1239, 0
      %v1266 = vsel %vm223, %v1240, 0
      %v1269 = vsel %vm223, %v1241, 0
      %1271 = vmatprep.subr.mxu0 0.0
      %1272 = vmatpush1.msra.mxu0 %v1243
      %1273 = vmatprep.subr.mxu0 0.0
      %1274 = vmatpush1.msra.mxu0 %v1244
      %1275 = vmatprep.subr.mxu0 0.0
      %1276 = vmatpush1.msra.mxu0 %v1245
      %1277 = vmatprep.subr.mxu0 0.0
      %1278 = vmatpush1.msra.mxu0 %v1246
      %1279 = vmatprep.subr.mxu0 0.0
      %1280 = vmatpush1.msra.mxu0 0.0
      %1281 = vmatprep.subr.mxu0 0.0
      %1282 = vmatpush1.msra.mxu0 0.0
      %1283 = vmatprep.subr.mxu0 0.0
      %1284 = vmatpush1.msra.mxu0 0.0
      %1285 = vmatprep.subr.mxu0 0.0
      %1286 = vmatpush1.msra.mxu0 0.0
      %1287 = vmatprep.subr.mxu0 0.0
      %1288 = vmatpush1.msra.mxu0 0.0
      %1289 = vmatprep.subr.mxu0 0.0
      %1290 = vmatpush1.msra.mxu0 0.0
      %1291 = vmatprep.subr.mxu0 0.0
      %1292 = vmatpush1.msra.mxu0 0.0
      %1293 = vmatprep.subr.mxu0 0.0
      %1294 = vmatpush1.msra.mxu0 0.0
      %1295 = vmatprep.subr.mxu0 0.0
      %1296 = vmatpush1.msra.mxu0 0.0
      %1297 = vmatprep.subr.mxu0 0.0
      %1298 = vmatpush1.msra.mxu0 0.0
      %1299 = vmatprep.subr.mxu0 0.0
      %1300 = vmatpush1.msra.mxu0 0.0
      %1301 = vmatprep.subr.mxu0 0.0
      %1302 = vmatpush1.msra.mxu0 0.0
      %1303 = vmatprep.subr.mxu0 0.0
      %1304 = vmatpush1.msra.mxu0 0.0
      %1305 = vmatprep.subr.mxu0 0.0
      %1306 = vmatpush1.msra.mxu0 0.0
      %1307 = vmatprep.subr.mxu0 0.0
      %1308 = vmatpush1.msra.mxu0 0.0
      %1309 = vmatprep.subr.mxu0 0.0
      %1310 = vmatpush1.msra.mxu0 0.0
      %1311 = vmatprep.subr.mxu0 0.0
      %1312 = vmatpush1.msra.mxu0 0.0
      %1313 = vmatprep.subr.mxu0 0.0
      %1314 = vmatpush1.msra.mxu0 0.0
      %1315 = vmatprep.subr.mxu0 0.0
      %1316 = vmatpush1.msra.mxu0 0.0
      %1317 = vmatprep.subr.mxu0 0.0
      %1318 = vmatpush1.msra.mxu0 0.0
      %1319 = vmatprep.subr.mxu0 0.0
      %1320 = vmatpush1.msra.mxu0 0.0
      %1321 = vmatprep.subr.mxu0 0.0
      %1322 = vmatpush1.msra.mxu0 0.0
      %1323 = vmatprep.subr.mxu0 0.0
      %1324 = vmatpush1.msra.mxu0 0.0
      %1325 = vmatprep.subr.mxu0 0.0
      %1326 = vmatpush1.msra.mxu0 0.0
      %1327 = vmatprep.subr.mxu0 0.0
      %1328 = vmatpush1.msra.mxu0 0.0
      %1329 = vmatprep.subr.mxu0 0.0
      %1330 = vmatpush1.msra.mxu0 0.0
      %1331 = vmatprep.subr.mxu0 0.0
      %1332 = vmatpush1.msra.mxu0 0.0
      %1333 = vmatprep.subr.mxu0 0.0
      %1334 = vmatpush1.msra.mxu0 0.0
      %1335 = vmatprep.mubr.f32.mxu0 0.0
      %1336 = vmatmul.mubr.f32.gmra.mrb[0].mxu0 %v1248
      %v1337 = vpop.f32.mrb[0].mxu0
      %v1338 = vadd.f32 0.0, %v1337
      %v1339 = vpop.f32.mrb[0].mxu0
      %1340 = vmatprep.mubr.f32.mxu0 0.0
      %1341 = vmatmul.mubr.f32.gmra.mrb[0].mxu0 %v1251
      %v1342 = vpop.f32.mrb[0].mxu0
      %v1343 = vadd.f32 0.0, %v1342
      %v1344 = vpop.f32.mrb[0].mxu0
      %1345 = vmatprep.mubr.f32.mxu0 0.0
      %1346 = vmatmul.mubr.f32.gmra.mrb[0].mxu0 %v1254
      %v1347 = vpop.f32.mrb[0].mxu0
      %v1348 = vadd.f32 0.0, %v1347
      %v1349 = vpop.f32.mrb[0].mxu0
      %1350 = vmatprep.mubr.f32.mxu0 0.0
      %1351 = vmatmul.mubr.f32.gmra.mrb[0].mxu0 %v1257
      %v1352 = vpop.f32.mrb[0].mxu0
      %v1353 = vadd.f32 0.0, %v1352
      %v1354 = vpop.f32.mrb[0].mxu0
      %1355 = vmatprep.mubr.f32.mxu0 0.0
      %1356 = vmatmul.mubr.f32.gmra.mrb[0].mxu0 %v1260
      %v1357 = vpop.f32.mrb[0].mxu0
      %v1358 = vadd.f32 0.0, %v1357
      %v1359 = vpop.f32.mrb[0].mxu0
      %1360 = vmatprep.mubr.f32.mxu0 0.0
      %1361 = vmatmul.mubr.f32.gmra.mrb[0].mxu0 %v1263
      %v1362 = vpop.f32.mrb[0].mxu0
      %v1363 = vadd.f32 0.0, %v1362
      %v1364 = vpop.f32.mrb[0].mxu0
      %1365 = vmatprep.mubr.f32.mxu0 0.0
      %1366 = vmatmul.mubr.f32.gmra.mrb[0].mxu0 %v1266
      %v1367 = vpop.f32.mrb[0].mxu0
      %v1368 = vadd.f32 0.0, %v1367
      %v1369 = vpop.f32.mrb[0].mxu0
      %1370 = vmatprep.mubr.f32.mxu0 0.0
      %1371 = vmatmul.mubr.f32.gmra.mrb[0].mxu0 %v1269
      %v1372 = vpop.f32.mrb[0].mxu0
      %v1373 = vadd.f32 0.0, %v1372
      %v1374 = vpop.f32.mrb[0].mxu0
      %1375 = vdwg.mxu0
      %v1376 = vadd.f32 %v1226, %v1338
      %v1377 = vadd.f32 %v1227, %v1343
      %v1378 = vadd.f32 %v1228, %v1348
      %v1379 = vadd.f32 %v1229, %v1353
      %v1380 = vadd.f32 %v1230, %v1358
      %v1381 = vadd.f32 %v1231, %v1363
      %v1382 = vadd.f32 %v1232, %v1368
      %v1383 = vadd.f32 %v1233, %v1373
      %v1384 = vld [vmem:[%s1083 + $0x2] sm:$0xff]
      %v1385 = vld [vmem:[%s1083 + $0x12] sm:$0xff]
      %v1386 = vld [vmem:[%s1083 + $0x22] sm:$0xff]
      %v1387 = vld [vmem:[%s1083 + $0x32] sm:$0xff]
      %v1388 = vld [vmem:[%s1083 + $0x42] sm:$0xff]
      %v1389 = vld [vmem:[%s1083 + $0x52] sm:$0xff]
      %v1390 = vld [vmem:[%s1083 + $0x62] sm:$0xff]
      %v1391 = vld [vmem:[%s1083 + $0x72] sm:$0xff]
      %s1392 = scalar_lea.vmem %s0, 256
      %v1393 = vld [vmem:[%s1392] sm:$0xff]
      %v1394 = vld [vmem:[%s1392 + $0x8] sm:$0xff]
      %v1395 = vld [vmem:[%s1392 + $0x10] sm:$0xff]
      %v1396 = vld [vmem:[%s1392 + $0x18] sm:$0xff]
      %v1398 = vsel %vm223, %v1384, 0
      %v1401 = vsel %vm223, %v1385, 0
      %v1404 = vsel %vm223, %v1386, 0
      %v1407 = vsel %vm223, %v1387, 0
      %v1410 = vsel %vm223, %v1388, 0
      %v1413 = vsel %vm223, %v1389, 0
      %v1416 = vsel %vm223, %v1390, 0
      %v1419 = vsel %vm223, %v1391, 0
      %1421 = vmatprep.subr.mxu0 0.0
      %1422 = vmatpush1.msra.mxu0 %v1393
      %1423 = vmatprep.subr.mxu0 0.0
      %1424 = vmatpush1.msra.mxu0 %v1394
      %1425 = vmatprep.subr.mxu0 0.0
      %1426 = vmatpush1.msra.mxu0 %v1395
      %1427 = vmatprep.subr.mxu0 0.0
      %1428 = vmatpush1.msra.mxu0 %v1396
      %1429 = vmatprep.subr.mxu0 0.0
      %1430 = vmatpush1.msra.mxu0 0.0
      %1431 = vmatprep.subr.mxu0 0.0
      %1432 = vmatpush1.msra.mxu0 0.0
      %1433 = vmatprep.subr.mxu0 0.0
      %1434 = vmatpush1.msra.mxu0 0.0
      %1435 = vmatprep.subr.mxu0 0.0
      %1436 = vmatpush1.msra.mxu0 0.0
      %1437 = vmatprep.subr.mxu0 0.0
      %1438 = vmatpush1.msra.mxu0 0.0
      %1439 = vmatprep.subr.mxu0 0.0
      %1440 = vmatpush1.msra.mxu0 0.0
      %1441 = vmatprep.subr.mxu0 0.0
      %1442 = vmatpush1.msra.mxu0 0.0
      %1443 = vmatprep.subr.mxu0 0.0
      %1444 = vmatpush1.msra.mxu0 0.0
      %1445 = vmatprep.subr.mxu0 0.0
      %1446 = vmatpush1.msra.mxu0 0.0
      %1447 = vmatprep.subr.mxu0 0.0
      %1448 = vmatpush1.msra.mxu0 0.0
      %1449 = vmatprep.subr.mxu0 0.0
      %1450 = vmatpush1.msra.mxu0 0.0
      %1451 = vmatprep.subr.mxu0 0.0
      %1452 = vmatpush1.msra.mxu0 0.0
      %1453 = vmatprep.subr.mxu0 0.0
      %1454 = vmatpush1.msra.mxu0 0.0
      %1455 = vmatprep.subr.mxu0 0.0
      %1456 = vmatpush1.msra.mxu0 0.0
      %1457 = vmatprep.subr.mxu0 0.0
      %1458 = vmatpush1.msra.mxu0 0.0
      %1459 = vmatprep.subr.mxu0 0.0
      %1460 = vmatpush1.msra.mxu0 0.0
      %1461 = vmatprep.subr.mxu0 0.0
      %1462 = vmatpush1.msra.mxu0 0.0
      %1463 = vmatprep.subr.mxu0 0.0
      %1464 = vmatpush1.msra.mxu0 0.0
      %1465 = vmatprep.subr.mxu0 0.0
      %1466 = vmatpush1.msra.mxu0 0.0
      %1467 = vmatprep.subr.mxu0 0.0
      %1468 = vmatpush1.msra.mxu0 0.0
      %1469 = vmatprep.subr.mxu0 0.0
      %1470 = vmatpush1.msra.mxu0 0.0
      %1471 = vmatprep.subr.mxu0 0.0
      %1472 = vmatpush1.msra.mxu0 0.0
      %1473 = vmatprep.subr.mxu0 0.0
      %1474 = vmatpush1.msra.mxu0 0.0
      %1475 = vmatprep.subr.mxu0 0.0
      %1476 = vmatpush1.msra.mxu0 0.0
      %1477 = vmatprep.subr.mxu0 0.0
      %1478 = vmatpush1.msra.mxu0 0.0
      %1479 = vmatprep.subr.mxu0 0.0
      %1480 = vmatpush1.msra.mxu0 0.0
      %1481 = vmatprep.subr.mxu0 0.0
      %1482 = vmatpush1.msra.mxu0 0.0
      %1483 = vmatprep.subr.mxu0 0.0
      %1484 = vmatpush1.msra.mxu0 0.0
      %1485 = vmatprep.mubr.f32.mxu0 0.0
      %1486 = vmatmul.mubr.f32.gmra.mrb[0].mxu0 %v1398
      %v1487 = vpop.f32.mrb[0].mxu0
      %v1488 = vadd.f32 0.0, %v1487
      %v1489 = vpop.f32.mrb[0].mxu0
      %1490 = vmatprep.mubr.f32.mxu0 0.0
      %1491 = vmatmul.mubr.f32.gmra.mrb[0].mxu0 %v1401
      %v1492 = vpop.f32.mrb[0].mxu0
      %v1493 = vadd.f32 0.0, %v1492
      %v1494 = vpop.f32.mrb[0].mxu0
      %1495 = vmatprep.mubr.f32.mxu0 0.0
      %1496 = vmatmul.mubr.f32.gmra.mrb[0].mxu0 %v1404
      %v1497 = vpop.f32.mrb[0].mxu0
      %v1498 = vadd.f32 0.0, %v1497
      %v1499 = vpop.f32.mrb[0].mxu0
      %1500 = vmatprep.mubr.f32.mxu0 0.0
      %1501 = vmatmul.mubr.f32.gmra.mrb[0].mxu0 %v1407
      %v1502 = vpop.f32.mrb[0].mxu0
      %v1503 = vadd.f32 0.0, %v1502
      %v1504 = vpop.f32.mrb[0].mxu0
      %1505 = vmatprep.mubr.f32.mxu0 0.0
      %1506 = vmatmul.mubr.f32.gmra.mrb[0].mxu0 %v1410
      %v1507 = vpop.f32.mrb[0].mxu0
      %v1508 = vadd.f32 0.0, %v1507
      %v1509 = vpop.f32.mrb[0].mxu0
      %1510 = vmatprep.mubr.f32.mxu0 0.0
      %1511 = vmatmul.mubr.f32.gmra.mrb[0].mxu0 %v1413
      %v1512 = vpop.f32.mrb[0].mxu0
      %v1513 = vadd.f32 0.0, %v1512
      %v1514 = vpop.f32.mrb[0].mxu0
      %1515 = vmatprep.mubr.f32.mxu0 0.0
      %1516 = vmatmul.mubr.f32.gmra.mrb[0].mxu0 %v1416
      %v1517 = vpop.f32.mrb[0].mxu0
      %v1518 = vadd.f32 0.0, %v1517
      %v1519 = vpop.f32.mrb[0].mxu0
      %1520 = vmatprep.mubr.f32.mxu0 0.0
      %1521 = vmatmul.mubr.f32.gmra.mrb[0].mxu0 %v1419
      %v1522 = vpop.f32.mrb[0].mxu0
      %v1523 = vadd.f32 0.0, %v1522
      %v1524 = vpop.f32.mrb[0].mxu0
      %1525 = vdwg.mxu0
      %v1526 = vadd.f32 %v1376, %v1488
      %v1527 = vadd.f32 %v1377, %v1493
      %v1528 = vadd.f32 %v1378, %v1498
      %v1529 = vadd.f32 %v1379, %v1503
      %v1530 = vadd.f32 %v1380, %v1508
      %v1531 = vadd.f32 %v1381, %v1513
      %v1532 = vadd.f32 %v1382, %v1518
      %v1533 = vadd.f32 %v1383, %v1523
      %v1534 = vld [vmem:[%s1] sm:$0x1]
      %v1536 = vlaneseq
      %v1537 = vshrl.u32 %v1536, 7
      %v1538 = vsub.s32 0, %v1537
      %v1539 = vrot.slane %v1534, %v1538
      %v1541 = vadd.f32 %v1526, %v1539
      %v1542 = vadd.f32 %v1527, %v1539
      %v1543 = vadd.f32 %v1528, %v1539
      %v1544 = vadd.f32 %v1529, %v1539
      %v1545 = vadd.f32 %v1530, %v1539
      %v1546 = vadd.f32 %v1531, %v1539
      %v1547 = vadd.f32 %v1532, %v1539
      %v1548 = vadd.f32 %v1533, %v1539
      %v1549 = vmax.f32 %v1541, 0.0
      %v1550 = vmax.f32 %v1542, 0.0
      %v1551 = vmax.f32 %v1543, 0.0
      %v1552 = vmax.f32 %v1544, 0.0
      %v1553 = vmax.f32 %v1545, 0.0
      %v1554 = vmax.f32 %v1546, 0.0
      %v1555 = vmax.f32 %v1547, 0.0
      %v1556 = vmax.f32 %v1548, 0.0
      %v1557 = vld [vmem:[%s2] sm:$0xff]
      %v1558 = vld [vmem:[%s2 + $0x8] sm:$0xff]
      %v1559 = vld [vmem:[%s2 + $0x10] sm:$0xff]
      %v1560 = vld [vmem:[%s2 + $0x18] sm:$0xff]
      %v1561 = vld [vmem:[%s2 + $0x20] sm:$0xff]
      %v1562 = vld [vmem:[%s2 + $0x28] sm:$0xff]
      %v1563 = vld [vmem:[%s2 + $0x30] sm:$0xff]
      %v1564 = vld [vmem:[%s2 + $0x38] sm:$0xff]
      %v1565 = vld [vmem:[%s2 + $0x40] sm:$0xff]
      %v1566 = vld [vmem:[%s2 + $0x48] sm:$0xff]
      %v1567 = vld [vmem:[%s2 + $0x50] sm:$0xff]
      %v1568 = vld [vmem:[%s2 + $0x58] sm:$0xff]
      %v1569 = vld [vmem:[%s2 + $0x60] sm:$0xff]
      %v1570 = vld [vmem:[%s2 + $0x68] sm:$0xff]
      %v1571 = vld [vmem:[%s2 + $0x70] sm:$0xff]
      %v1572 = vld [vmem:[%s2 + $0x78] sm:$0xff]
      %v1573 = vld [vmem:[%s2 + $0x80] sm:$0xff]
      %v1574 = vld [vmem:[%s2 + $0x88] sm:$0xff]
      %v1575 = vld [vmem:[%s2 + $0x90] sm:$0xff]
      %v1576 = vld [vmem:[%s2 + $0x98] sm:$0xff]
      %v1577 = vld [vmem:[%s2 + $0xa0] sm:$0xff]
      %v1578 = vld [vmem:[%s2 + $0xa8] sm:$0xff]
      %v1579 = vld [vmem:[%s2 + $0xb0] sm:$0xff]
      %v1580 = vld [vmem:[%s2 + $0xb8] sm:$0xff]
      %v1581 = vld [vmem:[%s2 + $0xc0] sm:$0xff]
      %v1582 = vld [vmem:[%s2 + $0xc8] sm:$0xff]
      %v1583 = vld [vmem:[%s2 + $0xd0] sm:$0xff]
      %v1584 = vld [vmem:[%s2 + $0xd8] sm:$0xff]
      %v1585 = vld [vmem:[%s2 + $0xe0] sm:$0xff]
      %v1586 = vld [vmem:[%s2 + $0xe8] sm:$0xff]
      %v1587 = vld [vmem:[%s2 + $0xf0] sm:$0xff]
      %v1588 = vld [vmem:[%s2 + $0xf8] sm:$0xff]
      %vm1589 = vcmask 523264
      %v1591 = vsel %vm1589, %v1557, 0
      %v1594 = vsel %vm1589, %v1558, 0
      %v1597 = vsel %vm1589, %v1559, 0
      %v1600 = vsel %vm1589, %v1560, 0
      %v1603 = vsel %vm1589, %v1561, 0
      %v1606 = vsel %vm1589, %v1562, 0
      %v1609 = vsel %vm1589, %v1563, 0
      %v1612 = vsel %vm1589, %v1564, 0
      %v1615 = vsel %vm1589, %v1565, 0
      %v1618 = vsel %vm1589, %v1566, 0
      %v1621 = vsel %vm1589, %v1567, 0
      %v1624 = vsel %vm1589, %v1568, 0
      %v1627 = vsel %vm1589, %v1569, 0
      %v1630 = vsel %vm1589, %v1570, 0
      %v1633 = vsel %vm1589, %v1571, 0
      %v1636 = vsel %vm1589, %v1572, 0
      %v1639 = vsel %vm1589, %v1573, 0
      %v1642 = vsel %vm1589, %v1574, 0
      %v1645 = vsel %vm1589, %v1575, 0
      %v1648 = vsel %vm1589, %v1576, 0
      %v1651 = vsel %vm1589, %v1577, 0
      %v1654 = vsel %vm1589, %v1578, 0
      %v1657 = vsel %vm1589, %v1579, 0
      %v1660 = vsel %vm1589, %v1580, 0
      %v1663 = vsel %vm1589, %v1581, 0
      %v1666 = vsel %vm1589, %v1582, 0
      %v1669 = vsel %vm1589, %v1583, 0
      %v1672 = vsel %vm1589, %v1584, 0
      %v1675 = vsel %vm1589, %v1585, 0
      %v1678 = vsel %vm1589, %v1586, 0
      %v1681 = vsel %vm1589, %v1587, 0
      %v1684 = vsel %vm1589, %v1588, 0
      %1686 = vmatprep.subr.mxu0 0.0
      %1687 = vmatpush1.msra.mxu0 %v1549
      %1688 = vmatprep.subr.mxu0 0.0
      %1689 = vmatpush1.msra.mxu0 %v1550
      %1690 = vmatprep.subr.mxu0 0.0
      %1691 = vmatpush1.msra.mxu0 %v1551
      %1692 = vmatprep.subr.mxu0 0.0
      %1693 = vmatpush1.msra.mxu0 %v1552
      %1694 = vmatprep.subr.mxu0 0.0
      %1695 = vmatpush1.msra.mxu0 %v1553
      %1696 = vmatprep.subr.mxu0 0.0
      %1697 = vmatpush1.msra.mxu0 %v1554
      %1698 = vmatprep.subr.mxu0 0.0
      %1699 = vmatpush1.msra.mxu0 %v1555
      %1700 = vmatprep.subr.mxu0 0.0
      %1701 = vmatpush1.msra.mxu0 %v1556
      %1702 = vmatprep.subr.mxu0 0.0
      %1703 = vmatpush1.msra.mxu0 0.0
      %1704 = vmatprep.subr.mxu0 0.0
      %1705 = vmatpush1.msra.mxu0 0.0
      %1706 = vmatprep.subr.mxu0 0.0
      %1707 = vmatpush1.msra.mxu0 0.0
      %1708 = vmatprep.subr.mxu0 0.0
      %1709 = vmatpush1.msra.mxu0 0.0
      %1710 = vmatprep.subr.mxu0 0.0
      %1711 = vmatpush1.msra.mxu0 0.0
      %1712 = vmatprep.subr.mxu0 0.0
      %1713 = vmatpush1.msra.mxu0 0.0
      %1714 = vmatprep.subr.mxu0 0.0
      %1715 = vmatpush1.msra.mxu0 0.0
      %1716 = vmatprep.subr.mxu0 0.0
      %1717 = vmatpush1.msra.mxu0 0.0
      %1718 = vmatprep.subr.mxu0 0.0
      %1719 = vmatpush1.msra.mxu0 0.0
      %1720 = vmatprep.subr.mxu0 0.0
      %1721 = vmatpush1.msra.mxu0 0.0
      %1722 = vmatprep.subr.mxu0 0.0
      %1723 = vmatpush1.msra.mxu0 0.0
      %1724 = vmatprep.subr.mxu0 0.0
      %1725 = vmatpush1.msra.mxu0 0.0
      %1726 = vmatprep.subr.mxu0 0.0
      %1727 = vmatpush1.msra.mxu0 0.0
      %1728 = vmatprep.subr.mxu0 0.0
      %1729 = vmatpush1.msra.mxu0 0.0
      %1730 = vmatprep.subr.mxu0 0.0
      %1731 = vmatpush1.msra.mxu0 0.0
      %1732 = vmatprep.subr.mxu0 0.0
      %1733 = vmatpush1.msra.mxu0 0.0
      %1734 = vmatprep.subr.mxu0 0.0
      %1735 = vmatpush1.msra.mxu0 0.0
      %1736 = vmatprep.subr.mxu0 0.0
      %1737 = vmatpush1.msra.mxu0 0.0
      %1738 = vmatprep.subr.mxu0 0.0
      %1739 = vmatpush1.msra.mxu0 0.0
      %1740 = vmatprep.subr.mxu0 0.0
      %1741 = vmatpush1.msra.mxu0 0.0
      %1742 = vmatprep.subr.mxu0 0.0
      %1743 = vmatpush1.msra.mxu0 0.0
      %1744 = vmatprep.subr.mxu0 0.0
      %1745 = vmatpush1.msra.mxu0 0.0
      %1746 = vmatprep.subr.mxu0 0.0
      %1747 = vmatpush1.msra.mxu0 0.0
      %1748 = vmatprep.subr.mxu0 0.0
      %1749 = vmatpush1.msra.mxu0 0.0
      %1750 = vmatprep.mubr.f32.mxu0 0.0
      %1751 = vmatmul.mubr.f32.gmra.mrb[0].mxu0 %v1591
      %v1752 = vpop.f32.mrb[0].mxu0
      %v1753 = vadd.f32 0.0, %v1752
      %v1754 = vpop.f32.mrb[0].mxu0
      %1755 = vmatprep.mubr.f32.mxu0 0.0
      %1756 = vmatmul.mubr.f32.gmra.mrb[0].mxu0 %v1594
      %v1757 = vpop.f32.mrb[0].mxu0
      %v1758 = vadd.f32 0.0, %v1757
      %v1759 = vpop.f32.mrb[0].mxu0
      %1760 = vmatprep.mubr.f32.mxu0 0.0
      %1761 = vmatmul.mubr.f32.gmra.mrb[0].mxu0 %v1597
      %v1762 = vpop.f32.mrb[0].mxu0
      %v1763 = vadd.f32 0.0, %v1762
      %v1764 = vpop.f32.mrb[0].mxu0
      %1765 = vmatprep.mubr.f32.mxu0 0.0
      %1766 = vmatmul.mubr.f32.gmra.mrb[0].mxu0 %v1600
      %v1767 = vpop.f32.mrb[0].mxu0
      %v1768 = vadd.f32 0.0, %v1767
      %v1769 = vpop.f32.mrb[0].mxu0
      %1770 = vmatprep.mubr.f32.mxu0 0.0
      %1771 = vmatmul.mubr.f32.gmra.mrb[0].mxu0 %v1603
      %v1772 = vpop.f32.mrb[0].mxu0
      %v1773 = vadd.f32 0.0, %v1772
      %v1774 = vpop.f32.mrb[0].mxu0
      %1775 = vmatprep.mubr.f32.mxu0 0.0
      %1776 = vmatmul.mubr.f32.gmra.mrb[0].mxu0 %v1606
      %v1777 = vpop.f32.mrb[0].mxu0
      %v1778 = vadd.f32 0.0, %v1777
      %v1779 = vpop.f32.mrb[0].mxu0
      %1780 = vmatprep.mubr.f32.mxu0 0.0
      %1781 = vmatmul.mubr.f32.gmra.mrb[0].mxu0 %v1609
      %v1782 = vpop.f32.mrb[0].mxu0
      %v1783 = vadd.f32 0.0, %v1782
      %v1784 = vpop.f32.mrb[0].mxu0
      %1785 = vmatprep.mubr.f32.mxu0 0.0
      %1786 = vmatmul.mubr.f32.gmra.mrb[0].mxu0 %v1612
      %v1787 = vpop.f32.mrb[0].mxu0
      %v1788 = vadd.f32 0.0, %v1787
      %v1789 = vpop.f32.mrb[0].mxu0
      %1790 = vmatprep.mubr.f32.mxu0 0.0
      %1791 = vmatmul.mubr.f32.gmra.mrb[0].mxu0 %v1615
      %v1792 = vpop.f32.mrb[0].mxu0
      %v1793 = vadd.f32 0.0, %v1792
      %v1794 = vpop.f32.mrb[0].mxu0
      %1795 = vmatprep.mubr.f32.mxu0 0.0
      %1796 = vmatmul.mubr.f32.gmra.mrb[0].mxu0 %v1618
      %v1797 = vpop.f32.mrb[0].mxu0
      %v1798 = vadd.f32 0.0, %v1797
      %v1799 = vpop.f32.mrb[0].mxu0
      %1800 = vmatprep.mubr.f32.mxu0 0.0
      %1801 = vmatmul.mubr.f32.gmra.mrb[0].mxu0 %v1621
      %v1802 = vpop.f32.mrb[0].mxu0
      %v1803 = vadd.f32 0.0, %v1802
      %v1804 = vpop.f32.mrb[0].mxu0
      %1805 = vmatprep.mubr.f32.mxu0 0.0
      %1806 = vmatmul.mubr.f32.gmra.mrb[0].mxu0 %v1624
      %v1807 = vpop.f32.mrb[0].mxu0
      %v1808 = vadd.f32 0.0, %v1807
      %v1809 = vpop.f32.mrb[0].mxu0
      %1810 = vmatprep.mubr.f32.mxu0 0.0
      %1811 = vmatmul.mubr.f32.gmra.mrb[0].mxu0 %v1627
      %v1812 = vpop.f32.mrb[0].mxu0
      %v1813 = vadd.f32 0.0, %v1812
      %v1814 = vpop.f32.mrb[0].mxu0
      %1815 = vmatprep.mubr.f32.mxu0 0.0
      %1816 = vmatmul.mubr.f32.gmra.mrb[0].mxu0 %v1630
      %v1817 = vpop.f32.mrb[0].mxu0
      %v1818 = vadd.f32 0.0, %v1817
      %v1819 = vpop.f32.mrb[0].mxu0
      %1820 = vmatprep.mubr.f32.mxu0 0.0
      %1821 = vmatmul.mubr.f32.gmra.mrb[0].mxu0 %v1633
      %v1822 = vpop.f32.mrb[0].mxu0
      %v1823 = vadd.f32 0.0, %v1822
      %v1824 = vpop.f32.mrb[0].mxu0
      %1825 = vmatprep.mubr.f32.mxu0 0.0
      %1826 = vmatmul.mubr.f32.gmra.mrb[0].mxu0 %v1636
      %v1827 = vpop.f32.mrb[0].mxu0
      %v1828 = vadd.f32 0.0, %v1827
      %v1829 = vpop.f32.mrb[0].mxu0
      %1830 = vmatprep.mubr.f32.mxu0 0.0
      %1831 = vmatmul.mubr.f32.gmra.mrb[0].mxu0 %v1639
      %v1832 = vpop.f32.mrb[0].mxu0
      %v1833 = vadd.f32 0.0, %v1832
      %v1834 = vpop.f32.mrb[0].mxu0
      %1835 = vmatprep.mubr.f32.mxu0 0.0
      %1836 = vmatmul.mubr.f32.gmra.mrb[0].mxu0 %v1642
      %v1837 = vpop.f32.mrb[0].mxu0
      %v1838 = vadd.f32 0.0, %v1837
      %v1839 = vpop.f32.mrb[0].mxu0
      %1840 = vmatprep.mubr.f32.mxu0 0.0
      %1841 = vmatmul.mubr.f32.gmra.mrb[0].mxu0 %v1645
      %v1842 = vpop.f32.mrb[0].mxu0
      %v1843 = vadd.f32 0.0, %v1842
      %v1844 = vpop.f32.mrb[0].mxu0
      %1845 = vmatprep.mubr.f32.mxu0 0.0
      %1846 = vmatmul.mubr.f32.gmra.mrb[0].mxu0 %v1648
      %v1847 = vpop.f32.mrb[0].mxu0
      %v1848 = vadd.f32 0.0, %v1847
      %v1849 = vpop.f32.mrb[0].mxu0
      %1850 = vmatprep.mubr.f32.mxu0 0.0
      %1851 = vmatmul.mubr.f32.gmra.mrb[0].mxu0 %v1651
      %v1852 = vpop.f32.mrb[0].mxu0
      %v1853 = vadd.f32 0.0, %v1852
      %v1854 = vpop.f32.mrb[0].mxu0
      %1855 = vmatprep.mubr.f32.mxu0 0.0
      %1856 = vmatmul.mubr.f32.gmra.mrb[0].mxu0 %v1654
      %v1857 = vpop.f32.mrb[0].mxu0
      %v1858 = vadd.f32 0.0, %v1857
      %v1859 = vpop.f32.mrb[0].mxu0
      %1860 = vmatprep.mubr.f32.mxu0 0.0
      %1861 = vmatmul.mubr.f32.gmra.mrb[0].mxu0 %v1657
      %v1862 = vpop.f32.mrb[0].mxu0
      %v1863 = vadd.f32 0.0, %v1862
      %v1864 = vpop.f32.mrb[0].mxu0
      %1865 = vmatprep.mubr.f32.mxu0 0.0
      %1866 = vmatmul.mubr.f32.gmra.mrb[0].mxu0 %v1660
      %v1867 = vpop.f32.mrb[0].mxu0
      %v1868 = vadd.f32 0.0, %v1867
      %v1869 = vpop.f32.mrb[0].mxu0
      %1870 = vmatprep.mubr.f32.mxu0 0.0
      %1871 = vmatmul.mubr.f32.gmra.mrb[0].mxu0 %v1663
      %v1872 = vpop.f32.mrb[0].mxu0
      %v1873 = vadd.f32 0.0, %v1872
      %v1874 = vpop.f32.mrb[0].mxu0
      %1875 = vmatprep.mubr.f32.mxu0 0.0
      %1876 = vmatmul.mubr.f32.gmra.mrb[0].mxu0 %v1666
      %v1877 = vpop.f32.mrb[0].mxu0
      %v1878 = vadd.f32 0.0, %v1877
      %v1879 = vpop.f32.mrb[0].mxu0
      %1880 = vmatprep.mubr.f32.mxu0 0.0
      %1881 = vmatmul.mubr.f32.gmra.mrb[0].mxu0 %v1669
      %v1882 = vpop.f32.mrb[0].mxu0
      %v1883 = vadd.f32 0.0, %v1882
      %v1884 = vpop.f32.mrb[0].mxu0
      %1885 = vmatprep.mubr.f32.mxu0 0.0
      %1886 = vmatmul.mubr.f32.gmra.mrb[0].mxu0 %v1672
      %v1887 = vpop.f32.mrb[0].mxu0
      %v1888 = vadd.f32 0.0, %v1887
      %v1889 = vpop.f32.mrb[0].mxu0
      %1890 = vmatprep.mubr.f32.mxu0 0.0
      %1891 = vmatmul.mubr.f32.gmra.mrb[0].mxu0 %v1675
      %v1892 = vpop.f32.mrb[0].mxu0
      %v1893 = vadd.f32 0.0, %v1892
      %v1894 = vpop.f32.mrb[0].mxu0
      %1895 = vmatprep.mubr.f32.mxu0 0.0
      %1896 = vmatmul.mubr.f32.gmra.mrb[0].mxu0 %v1678
      %v1897 = vpop.f32.mrb[0].mxu0
      %v1898 = vadd.f32 0.0, %v1897
      %v1899 = vpop.f32.mrb[0].mxu0
      %1900 = vmatprep.mubr.f32.mxu0 0.0
      %1901 = vmatmul.mubr.f32.gmra.mrb[0].mxu0 %v1681
      %v1902 = vpop.f32.mrb[0].mxu0
      %v1903 = vadd.f32 0.0, %v1902
      %v1904 = vpop.f32.mrb[0].mxu0
      %1905 = vmatprep.mubr.f32.mxu0 0.0
      %1906 = vmatmul.mubr.f32.gmra.mrb[0].mxu0 %v1684
      %v1907 = vpop.f32.mrb[0].mxu0
      %v1908 = vadd.f32 0.0, %v1907
      %v1909 = vpop.f32.mrb[0].mxu0
      %1910 = vdwg.mxu0
      %vm1911 = vcmask 130048
      %1912 = vst.msk [vmem:[%s197] sm:$0xff] %vm1911, %v1753
      %1913 = vst.msk [vmem:[%s197 + $0x8] sm:$0xff] %vm1911, %v1758
      %1914 = vst.msk [vmem:[%s197 + $0x10] sm:$0xff] %vm1911, %v1763
      %1915 = vst.msk [vmem:[%s197 + $0x18] sm:$0xff] %vm1911, %v1768
      %1916 = vst.msk [vmem:[%s197 + $0x20] sm:$0xff] %vm1911, %v1773
      %1917 = vst.msk [vmem:[%s197 + $0x28] sm:$0xff] %vm1911, %v1778
      %1918 = vst.msk [vmem:[%s197 + $0x30] sm:$0xff] %vm1911, %v1783
      %1919 = vst.msk [vmem:[%s197 + $0x38] sm:$0xff] %vm1911, %v1788
      %1920 = vst.msk [vmem:[%s197 + $0x40] sm:$0xff] %vm1911, %v1793
      %1921 = vst.msk [vmem:[%s197 + $0x48] sm:$0xff] %vm1911, %v1798
      %1922 = vst.msk [vmem:[%s197 + $0x50] sm:$0xff] %vm1911, %v1803
      %1923 = vst.msk [vmem:[%s197 + $0x58] sm:$0xff] %vm1911, %v1808
      %1924 = vst.msk [vmem:[%s197 + $0x60] sm:$0xff] %vm1911, %v1813
      %1925 = vst.msk [vmem:[%s197 + $0x68] sm:$0xff] %vm1911, %v1818
      %1926 = vst.msk [vmem:[%s197 + $0x70] sm:$0xff] %vm1911, %v1823
      %1927 = vst.msk [vmem:[%s197 + $0x78] sm:$0xff] %vm1911, %v1828
      %1928 = vst.msk [vmem:[%s197 + $0x80] sm:$0xff] %vm1911, %v1833
      %1929 = vst.msk [vmem:[%s197 + $0x88] sm:$0xff] %vm1911, %v1838
      %1930 = vst.msk [vmem:[%s197 + $0x90] sm:$0xff] %vm1911, %v1843
      %1931 = vst.msk [vmem:[%s197 + $0x98] sm:$0xff] %vm1911, %v1848
      %1932 = vst.msk [vmem:[%s197 + $0xa0] sm:$0xff] %vm1911, %v1853
      %1933 = vst.msk [vmem:[%s197 + $0xa8] sm:$0xff] %vm1911, %v1858
      %1934 = vst.msk [vmem:[%s197 + $0xb0] sm:$0xff] %vm1911, %v1863
      %1935 = vst.msk [vmem:[%s197 + $0xb8] sm:$0xff] %vm1911, %v1868
      %1936 = vst.msk [vmem:[%s197 + $0xc0] sm:$0xff] %vm1911, %v1873
      %1937 = vst.msk [vmem:[%s197 + $0xc8] sm:$0xff] %vm1911, %v1878
      %1938 = vst.msk [vmem:[%s197 + $0xd0] sm:$0xff] %vm1911, %v1883
      %1939 = vst.msk [vmem:[%s197 + $0xd8] sm:$0xff] %vm1911, %v1888
      %1940 = vst.msk [vmem:[%s197 + $0xe0] sm:$0xff] %vm1911, %v1893
      %1941 = vst.msk [vmem:[%s197 + $0xe8] sm:$0xff] %vm1911, %v1898
      %1942 = vst.msk [vmem:[%s197 + $0xf0] sm:$0xff] %vm1911, %v1903
      %1943 = vst.msk [vmem:[%s197 + $0xf8] sm:$0xff] %vm1911, %v1908
      %p1944 = scmp.lt.s32.totalorder %s15, 1
      %s1945 = scalar_select %p1944, %s15, 1
      %s1946 = smul.addr %s1945, 32
      %s1947 = smul.addr %s1946, 8
      %s1948 = scalar_lea.vmem %s4, %s1947
      // Predicated region
      $region37: #{tpu_custom_call.1} parent=35 // pred_check
        %p1949 = pneg %p122
      $region38: #{tpu_custom_call.1} parent=35 // pred_check_branch
        %1951 = sbr.rel (%p1949) target = $region40
      $region39: #{tpu_custom_call.1} parent=35 // pred_region
        _
      $region40: #{tpu_custom_call.1} parent=35 // pred_fallthru
        _
    $region36: #{tpu_custom_call.1} parent=5 // pred_fallthru
      _
    %p1952 = scmp.le.s32.totalorder 2, %s10
    // Predicated region
    $region41: #{tpu_custom_call.1} parent=5 // pred_check
      %p1953 = pneg %p1952
    $region42: #{tpu_custom_call.1} parent=5 // pred_check_branch
      %1955 = sbr.rel (%p1953) target = $region44
    $region43: #{tpu_custom_call.1} parent=5 // pred_region
      %s1956 = ssub.s32 %s10, 2
      // Predicated region
      $region45: #{tpu_custom_call.1} parent=43 // pred_check
        %p1957 = pneg %p128
      $region46: #{tpu_custom_call.1} parent=43 // pred_check_branch
        %1959 = sbr.rel (%p1957) target = $region48
      $region47: #{tpu_custom_call.1} parent=43 // pred_region
        %p1960 = scmp.lt.s32.totalorder %s16, 1
        %s1961 = scalar_select %p1960, %s16, 1
        %s1962 = smul.addr %s1961, 32
        %s1963 = smul.addr %s1962, 8
        %s1964 = scalar_lea.vmem %s4, %s1963
      $region48: #{tpu_custom_call.1} parent=43 // pred_fallthru
        _
    $region44: #{tpu_custom_call.1} parent=5 // pred_fallthru
      _
  $region6: #{tpu_custom_call.1} parent=0 // loop_footer
    %s14 = sadd.s32 1, %s10
  $region7: #{tpu_custom_call.1} parent=0 // loop_footer_branch
    %9 = sbr.rel target = $region3
  $region8: #{tpu_custom_call.1} parent=0 // loop_exit
    _

</llo_original>
